<compile_context>
chip_gen: v5e
topology: v5e:2x2
jax: 0.10.0
libtpu: 0.0.40
codegen_flags: <defaults>
</compile_context>

<pallas_src>
import jax
import jax.numpy as jnp
from jax.experimental import pallas as pl
from jax.experimental.pallas import tpu as pltpu
from jax.scipy.linalg import block_diag


N_TIME = 7         # forward implies 7 timesteps (Linear(emb_dim*7, emb_dim))
N_HEAD_OUT = 12    # each prediction head outputs 12 logits
HEAD_PAD = 128     # fused head padded to 128 lanes -> unmasked output stores


# --------------------------------------------------------------------------------------
# Pallas kernel: whole post-encoder forward pass, 6 lane-dense bf16 matmuls per batch tile.
# --------------------------------------------------------------------------------------
def three_mul_kernel(
    # batch-tiled activations
    sql_ref,                 # (TB, 768) bf16   sql.last_hidden_state[:, 0, :]
    plan_ref,                # (TB, E)   f32    plan_emb[:, 0, :] (QueryFormer CLS, precomputed)
    lt_ref,                  # (TB, L_IN + 7*T_IN) f32  [log_x | time_x flattened t-major]
    # VMEM-resident packed weights (bf16) and biases (f32)
    w_sql_ref, b_sql_ref,    # (768, E), (1, E)
    w1_ref, b1_ref,          # block-diag(log ll_1, time ll_1 x7) : (136, 256), (1, 256)
    w2_ref, b2_ref,          # block-diag(log ll_2, time ll_2 x7) : (256, 256), (1, 256)
    w3_ref, b3_ref,          # block-diag(log cls , time cls  x7) : (256, 256), (1, 256)
    wtt_ref, btt_ref,        # time_tran_emb flattened            : (7E, E),   (1, E)
    wh_ref, bh_ref,          # fused, zero-padded head            : (4E, 128), (1, 128)
    # output
    out_ref,                 # (TB, 128)  [sigmoid(label) | opt | zero pad]
):
    bf16, f32 = jnp.bfloat16, jnp.float32
    E = b_sql_ref.shape[-1]

    def lin(x, w_ref, b_ref):
        # bf16 operands, f32 accumulation, f32 bias add
        return jnp.dot(x.astype(bf16), w_ref[...], preferred_element_type=f32) + b_ref[...]

    # ---- sql branch: one bf16 K=768 matmul --------------------------------------------
    sql_e = lin(sql_ref[...], w_sql_ref, b_sql_ref)                       # (TB, E)

    # ---- log + time branches fused via block-diagonal weights -------------------------
    # hidden lanes are laid out [log | t0 | t1 | ... | t6]
    h = jnp.maximum(lin(lt_ref[...], w1_ref, b1_ref), 0.0)
    h = jnp.maximum(lin(h, w2_ref, b2_ref), 0.0)
    h = lin(h, w3_ref, b3_ref)                                            # (TB, E + 7E)
    log_e = h[:, :E]                          # LogModel.cls output (no final relu)
    time_h = jnp.maximum(h[:, E:], 0.0)       # TimeSeriesModel final relu, (TB, 7E) t-major
    # flatten(start_dim=1) + Linear(7E, E) == one K=7E matmul on the t-major lanes
    time_e = lin(time_h, wtt_ref, btt_ref)                                # (TB, E)

    # ---- concat in registers (4E = 128 lanes), fused heads, sigmoid on label half -----
    cat = jnp.concatenate([sql_e, plan_ref[...], log_e, time_e], axis=-1)  # (TB, 128) f32
    head = lin(cat, wh_ref, bh_ref)                                        # (TB, 128)
    col = jax.lax.broadcasted_iota(jnp.int32, head.shape, 1)
    out_ref[...] = jnp.where(col < N_HEAD_OUT, jax.nn.sigmoid(head), head)


# --------------------------------------------------------------------------------------
# Parameter construction (deterministic, xavier-uniform weights, zero biases).
# --------------------------------------------------------------------------------------
def _xavier(key, fan_in, fan_out):
    bound = jnp.sqrt(6.0 / (fan_in + fan_out))
    # generated directly in (in, out) layout — symmetric distribution, transpose-invariant
    return jax.random.uniform(key, (fan_in, fan_out), jnp.float32, -bound, bound)


def init_params(key, t_input_dim, l_input_dim, l_hidden_dim, t_hidden_dim, emb_dim):
    ks = jax.random.split(key, 10)
    z = lambda n: jnp.zeros((1, n), jnp.float32)
    return {
        # sql_last_emb : Linear(768, emb_dim)
        "w_sql": _xavier(ks[0], 768, emb_dim), "b_sql": z(emb_dim),
        # TimeSeriesModel
        "wt1": _xavier(ks[1], t_input_dim, t_hidden_dim), "bt1": z(t_hidden_dim),
        "wt2": _xavier(ks[2], t_hidden_dim, t_hidden_dim), "bt2": z(t_hidden_dim),
        "wt3": _xavier(ks[3], t_hidden_dim, emb_dim), "bt3": z(emb_dim),
        # LogModel
        "wl1": _xavier(ks[4], l_input_dim, l_hidden_dim), "bl1": z(l_hidden_dim),
        "wl2": _xavier(ks[5], l_hidden_dim, l_hidden_dim), "bl2": z(l_hidden_dim),
        "wl3": _xavier(ks[6], l_hidden_dim, emb_dim), "bl3": z(emb_dim),
        # time_tran_emb : Linear(7*emb_dim, emb_dim), stored (7E, E)
        "wtt": _xavier(ks[7], N_TIME * emb_dim, emb_dim), "btt": z(emb_dim),
        # TODO(synk): original module declares pred_*_concat as Linear(emb_dim*3, 12), but its
        # forward concatenates FOUR emb_dim chunks (shape bug in the reference); the head is
        # sized 4*emb_dim here so the forward actually runs.
        "wpl": _xavier(ks[8], 4 * emb_dim, N_HEAD_OUT), "bpl": z(N_HEAD_OUT),
        "wpo": _xavier(ks[9], 4 * emb_dim, N_HEAD_OUT), "bpo": z(N_HEAD_OUT),
    }


def pack_params(p):
    """One-time repack of the per-layer weights into the kernel's fused bf16 layout."""
    bf16 = jnp.bfloat16
    bd7 = lambda w: block_diag(*([w] * N_TIME))
    cat_b = lambda bl, bt: jnp.concatenate([bl, jnp.tile(bt, (1, N_TIME))], axis=1)
    # fused [pred_label_concat | pred_opt_concat] head, zero-padded to 128 output lanes
    wh = jnp.concatenate([p["wpl"], p["wpo"]], axis=1)
    bh = jnp.concatenate([p["bpl"], p["bpo"]], axis=1)
    wh = jnp.pad(wh, ((0, 0), (0, HEAD_PAD - 2 * N_HEAD_OUT)))
    bh = jnp.pad(bh, ((0, 0), (0, HEAD_PAD - 2 * N_HEAD_OUT)))
    return {
        "w_sql": p["w_sql"].astype(bf16), "b_sql": p["b_sql"],
        # block-diagonal fusion of LogModel + 7x TimeSeriesModel layers
        "w1": block_diag(p["wl1"], bd7(p["wt1"])).astype(bf16), "b1": cat_b(p["bl1"], p["bt1"]),
        "w2": block_diag(p["wl2"], bd7(p["wt2"])).astype(bf16), "b2": cat_b(p["bl2"], p["bt2"]),
        "w3": block_diag(p["wl3"], bd7(p["wt3"])).astype(bf16), "b3": cat_b(p["bl3"], p["bt3"]),
        "wtt": p["wtt"].astype(bf16), "btt": p["btt"],
        "wh": wh.astype(bf16), "bh": bh,
    }


# --------------------------------------------------------------------------------------
# Wrapper
# --------------------------------------------------------------------------------------
def three_mul_forward(sql_last_hidden, plan_emb, time_x, log_x, packed, *, tb=512):
    f32 = jnp.float32
    B = log_x.shape[0]
    n_t, t_in = time_x.shape[1], time_x.shape[2]

    # glue (CLS slicing / flatten / concat) stays in plain JAX outside the kernel
    # TODO(synk): a size-1 seq block on the 3-D sql input would avoid this slice+cast pass,
    # but it violates the (8,128) block constraint on the seq dim, so the slice stays here.
    sql_cls = sql_last_hidden[:, 0, :].astype(jnp.bfloat16)        # bf16 MXU operand
    plan_cls = plan_emb[:, 0, :].astype(f32)
    lt = jnp.concatenate(
        [log_x.astype(f32), time_x.reshape(B, n_t * t_in).astype(f32)], axis=1)

    # tiny batches collapse to a single grid step; keep rows a multiple of 16 (bf16 sublanes)
    tb = min(tb, 16 * pl.cdiv(B, 16))
    bp = pl.cdiv(B, tb) * tb
    if bp != B:
        pad = ((0, bp - B), (0, 0))
        sql_cls, plan_cls, lt = (jnp.pad(a, pad) for a in (sql_cls, plan_cls, lt))

    acts = (sql_cls, plan_cls, lt)
    weights = (packed["w_sql"], packed["b_sql"],
               packed["w1"], packed["b1"], packed["w2"], packed["b2"],
               packed["w3"], packed["b3"],
               packed["wtt"], packed["btt"], packed["wh"], packed["bh"])

    act_specs = [pl.BlockSpec((tb, a.shape[1]), lambda i: (i, 0)) for a in acts]
    # weights: full-shape blocks, constant index_map -> fetched once, VMEM resident
    w_specs = [pl.BlockSpec(w.shape, lambda i: (0, 0)) for w in weights]

    mm_ws = (packed["w_sql"], packed["w1"], packed["w2"], packed["w3"],
             packed["wtt"], packed["wh"])
    flops = int(2 * bp * sum(int(w.shape[0]) * int(w.shape[1]) for w in mm_ws))
    bytes_accessed = int(sum(int(a.size) * a.dtype.itemsize for a in acts)
                         + sum(int(w.size) * w.dtype.itemsize for w in weights)
                         + bp * HEAD_PAD * 4)
    transcendentals = int(bp * HEAD_PAD)

    out = pl.pallas_call(
        three_mul_kernel,
        out_shape=jax.ShapeDtypeStruct((bp, HEAD_PAD), f32),
        grid=(bp // tb,),
        in_specs=act_specs + w_specs,
        out_specs=pl.BlockSpec((tb, HEAD_PAD), lambda i: (i, 0)),
        compiler_params=pltpu.CompilerParams(dimension_semantics=("parallel",)),
        cost_estimate=pl.CostEstimate(flops=flops, transcendentals=transcendentals,
                                      bytes_accessed=bytes_accessed),
    )(*acts, *weights)

    out = out[:B]
    return out[:, :N_HEAD_OUT], out[:, N_HEAD_OUT:2 * N_HEAD_OUT]


# --------------------------------------------------------------------------------------
# Pure-JAX reference (correctness check; mirrors the kernel's bf16-operand / f32-acc math)
# --------------------------------------------------------------------------------------
def reference_forward(sql_last_hidden, plan_emb, time_x, log_x, p):
    f32, bf16 = jnp.float32, jnp.bfloat16

    def blin(x, w, b):  # bf16-quantized operands, f32 accumulation (matches MXU semantics)
        return jnp.dot(x.astype(bf16).astype(f32), w.astype(bf16).astype(f32)) + b

    relu = lambda x: jnp.maximum(x, 0.0)
    sql_e = blin(sql_last_hidden[:, 0, :], p["w_sql"], p["b_sql"])
    plan_e = plan_emb[:, 0, :]
    h = relu(blin(log_x, p["wl1"], p["bl1"]))
    h = relu(blin(h, p["wl2"], p["bl2"]))
    log_e = blin(h, p["wl3"], p["bl3"])
    h = relu(blin(time_x, p["wt1"], p["bt1"]))
    h = relu(blin(h, p["wt2"], p["bt2"]))
    h = relu(blin(h, p["wt3"], p["bt3"]))                    # (B, 7, E)
    time_e = blin(h.reshape(time_x.shape[0], -1), p["wtt"], p["btt"])
    emb = jnp.concatenate([sql_e, plan_e, log_e, time_e], axis=1)
    lab = blin(emb, p["wpl"], p["bpl"])
    opt = blin(emb, p["wpo"], p["bpo"])
    return jax.nn.sigmoid(lab), opt


if __name__ == "__main__":
    # small shapes consistent with the module; B=32 collapses to one 32-row grid step
    B = 32
    EMB = 32            # emb_dim
    T_IN, T_H = 16, 32  # t_input_dim, t_hidden_dim
    L_IN, L_H = 24, 32  # l_input_dim, l_hidden_dim
    SQL_SEQ, SQL_HID = 8, 768
    PLAN_SEQ = 4

    key = jax.random.PRNGKey(0)
    k_sql, k_plan, k_time, k_log, k_par = jax.random.split(key, 5)
    sql_last_hidden = jax.random.normal(k_sql, (B, SQL_SEQ, SQL_HID), jnp.float32)
    plan_emb = jax.random.normal(k_plan, (B, PLAN_SEQ, EMB), jnp.float32)
    time_x = jax.random.normal(k_time, (B, N_TIME, T_IN), jnp.float32)
    log_x = jax.random.normal(k_log, (B, L_IN), jnp.float32)

    params = init_params(k_par, T_IN, L_IN, L_H, T_H, EMB)
    packed = pack_params(params)

    pred_label, pred_opt = three_mul_forward(
        sql_last_hidden, plan_emb, time_x, log_x, packed, tb=512)
    jax.block_until_ready((pred_label, pred_opt))

    ref_label, ref_opt = reference_forward(sql_last_hidden, plan_emb, time_x, log_x, params)
    assert pred_label.shape == (B, N_HEAD_OUT) and pred_opt.shape == (B, N_HEAD_OUT)
    # tolerance covers MXU accumulation-order differences of the fused block-diagonal /
    # concatenated matmuls (operand quantization to bf16 is matched in the reference)
    assert jnp.allclose(pred_label, ref_label, atol=2e-3, rtol=2e-3), \
        float(jnp.max(jnp.abs(pred_label - ref_label)))
    assert jnp.allclose(pred_opt, ref_opt, atol=2e-3, rtol=2e-3), \
        float(jnp.max(jnp.abs(pred_opt - ref_opt)))

    print("KERNEL_OK")
</pallas_src>

<mosaic_0001>
module attributes {stable_mosaic.version = 11 : i64} {
  func.func @three_mul_kernel(%arg0: i32, %arg1: memref<32x768xbf16, #tpu.memory_space<vmem>>, %arg2: memref<32x32xf32, #tpu.memory_space<vmem>>, %arg3: memref<32x136xf32, #tpu.memory_space<vmem>>, %arg4: memref<768x32xbf16, #tpu.memory_space<vmem>>, %arg5: memref<1x32xf32, #tpu.memory_space<vmem>>, %arg6: memref<136x256xbf16, #tpu.memory_space<vmem>>, %arg7: memref<1x256xf32, #tpu.memory_space<vmem>>, %arg8: memref<256x256xbf16, #tpu.memory_space<vmem>>, %arg9: memref<1x256xf32, #tpu.memory_space<vmem>>, %arg10: memref<256x256xbf16, #tpu.memory_space<vmem>>, %arg11: memref<1x256xf32, #tpu.memory_space<vmem>>, %arg12: memref<224x32xbf16, #tpu.memory_space<vmem>>, %arg13: memref<1x32xf32, #tpu.memory_space<vmem>>, %arg14: memref<128x128xbf16, #tpu.memory_space<vmem>>, %arg15: memref<1x128xf32, #tpu.memory_space<vmem>>, %arg16: memref<32x128xf32, #tpu.memory_space<vmem>>) attributes {dimension_semantics = [#tpu.dimension_semantics<parallel>], iteration_bounds = array<i64: 1>, scalar_prefetch = 0 : i64, scratch_operands = 0 : i64, tpu.core_type = #tpu.core_type<tc>, window_params = [{transform_indices = @transform_0, window_bounds = array<i64: 32, 768>}, {transform_indices = @transform_1, window_bounds = array<i64: 32, 32>}, {transform_indices = @transform_2, window_bounds = array<i64: 32, 136>}, {pipeline_mode = #tpu.pipeline_mode<synchronous>, transform_indices = @transform_3, window_bounds = array<i64: 768, 32>}, {pipeline_mode = #tpu.pipeline_mode<synchronous>, transform_indices = @transform_4, window_bounds = array<i64: 1, 32>}, {pipeline_mode = #tpu.pipeline_mode<synchronous>, transform_indices = @transform_5, window_bounds = array<i64: 136, 256>}, {pipeline_mode = #tpu.pipeline_mode<synchronous>, transform_indices = @transform_6, window_bounds = array<i64: 1, 256>}, {pipeline_mode = #tpu.pipeline_mode<synchronous>, transform_indices = @transform_7, window_bounds = array<i64: 256, 256>}, {pipeline_mode = #tpu.pipeline_mode<synchronous>, transform_indices = @transform_8, window_bounds = array<i64: 1, 256>}, {pipeline_mode = #tpu.pipeline_mode<synchronous>, transform_indices = @transform_9, window_bounds = array<i64: 256, 256>}, {pipeline_mode = #tpu.pipeline_mode<synchronous>, transform_indices = @transform_10, window_bounds = array<i64: 1, 256>}, {pipeline_mode = #tpu.pipeline_mode<synchronous>, transform_indices = @transform_11, window_bounds = array<i64: 224, 32>}, {pipeline_mode = #tpu.pipeline_mode<synchronous>, transform_indices = @transform_12, window_bounds = array<i64: 1, 32>}, {pipeline_mode = #tpu.pipeline_mode<synchronous>, transform_indices = @transform_13, window_bounds = array<i64: 128, 128>}, {pipeline_mode = #tpu.pipeline_mode<synchronous>, transform_indices = @transform_14, window_bounds = array<i64: 1, 128>}, {transform_indices = @transform_15, window_bounds = array<i64: 32, 128>}]} {
    %c0 = arith.constant 0 : index
    %c0_0 = arith.constant 0 : index
    %0 = vector.load %arg1[%c0, %c0_0] : memref<32x768xbf16, #tpu.memory_space<vmem>>, vector<32x768xbf16>
    %c0_1 = arith.constant 0 : index
    %c0_2 = arith.constant 0 : index
    %1 = vector.load %arg4[%c0_1, %c0_2] : memref<768x32xbf16, #tpu.memory_space<vmem>>, vector<768x32xbf16>
    %cst = arith.constant dense<0.000000e+00> : vector<32x32xf32>
    %2 = tpu.matmul %0, %1, %cst {dimension_numbers = #tpu.dot_dimension_numbers<[1], [0], [0], [1], [0, 0, 1, 1], [], []>} : vector<32x768xbf16>, vector<768x32xbf16>, vector<32x32xf32> -> vector<32x32xf32>
    %c0_3 = arith.constant 0 : index
    %c0_4 = arith.constant 0 : index
    %3 = vector.load %arg5[%c0_3, %c0_4] : memref<1x32xf32, #tpu.memory_space<vmem>>, vector<1x32xf32>
    %4 = vector.broadcast %3 : vector<1x32xf32> to vector<32x32xf32>
    %5 = arith.addf %2, %4 : vector<32x32xf32>
    %c0_5 = arith.constant 0 : index
    %c0_6 = arith.constant 0 : index
    %6 = vector.load %arg3[%c0_5, %c0_6] : memref<32x136xf32, #tpu.memory_space<vmem>>, vector<32x136xf32>
    %7 = arith.truncf %6 : vector<32x136xf32> to vector<32x136xbf16>
    %c0_7 = arith.constant 0 : index
    %c0_8 = arith.constant 0 : index
    %8 = vector.load %arg6[%c0_7, %c0_8] : memref<136x256xbf16, #tpu.memory_space<vmem>>, vector<136x256xbf16>
    %cst_9 = arith.constant dense<0.000000e+00> : vector<32x256xf32>
    %9 = tpu.matmul %7, %8, %cst_9 {dimension_numbers = #tpu.dot_dimension_numbers<[1], [0], [0], [1], [0, 0, 1, 1], [], []>} : vector<32x136xbf16>, vector<136x256xbf16>, vector<32x256xf32> -> vector<32x256xf32>
    %c0_10 = arith.constant 0 : index
    %c0_11 = arith.constant 0 : index
    %10 = vector.load %arg7[%c0_10, %c0_11] : memref<1x256xf32, #tpu.memory_space<vmem>>, vector<1x256xf32>
    %11 = vector.broadcast %10 : vector<1x256xf32> to vector<32x256xf32>
    %12 = arith.addf %9, %11 : vector<32x256xf32>
    %cst_12 = arith.constant 0.000000e+00 : f32
    %13 = vector.broadcast %cst_12 : f32 to vector<32x256xf32>
    %14 = arith.maximumf %12, %13 : vector<32x256xf32>
    %15 = arith.truncf %14 : vector<32x256xf32> to vector<32x256xbf16>
    %c0_13 = arith.constant 0 : index
    %c0_14 = arith.constant 0 : index
    %16 = vector.load %arg8[%c0_13, %c0_14] : memref<256x256xbf16, #tpu.memory_space<vmem>>, vector<256x256xbf16>
    %cst_15 = arith.constant dense<0.000000e+00> : vector<32x256xf32>
    %17 = tpu.matmul %15, %16, %cst_15 {dimension_numbers = #tpu.dot_dimension_numbers<[1], [0], [0], [1], [0, 0, 1, 1], [], []>} : vector<32x256xbf16>, vector<256x256xbf16>, vector<32x256xf32> -> vector<32x256xf32>
    %c0_16 = arith.constant 0 : index
    %c0_17 = arith.constant 0 : index
    %18 = vector.load %arg9[%c0_16, %c0_17] : memref<1x256xf32, #tpu.memory_space<vmem>>, vector<1x256xf32>
    %19 = vector.broadcast %18 : vector<1x256xf32> to vector<32x256xf32>
    %20 = arith.addf %17, %19 : vector<32x256xf32>
    %cst_18 = arith.constant 0.000000e+00 : f32
    %21 = vector.broadcast %cst_18 : f32 to vector<32x256xf32>
    %22 = arith.maximumf %20, %21 : vector<32x256xf32>
    %23 = arith.truncf %22 : vector<32x256xf32> to vector<32x256xbf16>
    %c0_19 = arith.constant 0 : index
    %c0_20 = arith.constant 0 : index
    %24 = vector.load %arg10[%c0_19, %c0_20] : memref<256x256xbf16, #tpu.memory_space<vmem>>, vector<256x256xbf16>
    %cst_21 = arith.constant dense<0.000000e+00> : vector<32x256xf32>
    %25 = tpu.matmul %23, %24, %cst_21 {dimension_numbers = #tpu.dot_dimension_numbers<[1], [0], [0], [1], [0, 0, 1, 1], [], []>} : vector<32x256xbf16>, vector<256x256xbf16>, vector<32x256xf32> -> vector<32x256xf32>
    %c0_22 = arith.constant 0 : index
    %c0_23 = arith.constant 0 : index
    %26 = vector.load %arg11[%c0_22, %c0_23] : memref<1x256xf32, #tpu.memory_space<vmem>>, vector<1x256xf32>
    %27 = vector.broadcast %26 : vector<1x256xf32> to vector<32x256xf32>
    %28 = arith.addf %25, %27 : vector<32x256xf32>
    %29 = vector.extract_strided_slice %28 {offsets = [0, 0], sizes = [32, 32], strides = [1, 1]} : vector<32x256xf32> to vector<32x32xf32>
    %30 = vector.extract_strided_slice %28 {offsets = [0, 32], sizes = [32, 224], strides = [1, 1]} : vector<32x256xf32> to vector<32x224xf32>
    %cst_24 = arith.constant 0.000000e+00 : f32
    %31 = vector.broadcast %cst_24 : f32 to vector<32x224xf32>
    %32 = arith.maximumf %30, %31 : vector<32x224xf32>
    %33 = arith.truncf %32 : vector<32x224xf32> to vector<32x224xbf16>
    %c0_25 = arith.constant 0 : index
    %c0_26 = arith.constant 0 : index
    %34 = vector.load %arg12[%c0_25, %c0_26] : memref<224x32xbf16, #tpu.memory_space<vmem>>, vector<224x32xbf16>
    %cst_27 = arith.constant dense<0.000000e+00> : vector<32x32xf32>
    %35 = tpu.matmul %33, %34, %cst_27 {dimension_numbers = #tpu.dot_dimension_numbers<[1], [0], [0], [1], [0, 0, 1, 1], [], []>} : vector<32x224xbf16>, vector<224x32xbf16>, vector<32x32xf32> -> vector<32x32xf32>
    %c0_28 = arith.constant 0 : index
    %c0_29 = arith.constant 0 : index
    %36 = vector.load %arg13[%c0_28, %c0_29] : memref<1x32xf32, #tpu.memory_space<vmem>>, vector<1x32xf32>
    %37 = vector.broadcast %36 : vector<1x32xf32> to vector<32x32xf32>
    %38 = arith.addf %35, %37 : vector<32x32xf32>
    %c0_30 = arith.constant 0 : index
    %c0_31 = arith.constant 0 : index
    %39 = vector.load %arg2[%c0_30, %c0_31] : memref<32x32xf32, #tpu.memory_space<vmem>>, vector<32x32xf32>
    %40 = tpu.concatenate %5, %39, %29, %38 in 1 : vector<32x32xf32>, vector<32x32xf32>, vector<32x32xf32>, vector<32x32xf32> -> vector<32x128xf32>
    %41 = arith.truncf %40 : vector<32x128xf32> to vector<32x128xbf16>
    %c0_32 = arith.constant 0 : index
    %c0_33 = arith.constant 0 : index
    %42 = vector.load %arg14[%c0_32, %c0_33] : memref<128x128xbf16, #tpu.memory_space<vmem>>, vector<128x128xbf16>
    %cst_34 = arith.constant dense<0.000000e+00> : vector<32x128xf32>
    %43 = tpu.matmul %41, %42, %cst_34 {dimension_numbers = #tpu.dot_dimension_numbers<[1], [0], [0], [1], [0, 0, 1, 1], [], []>} : vector<32x128xbf16>, vector<128x128xbf16>, vector<32x128xf32> -> vector<32x128xf32>
    %c0_35 = arith.constant 0 : index
    %c0_36 = arith.constant 0 : index
    %44 = vector.load %arg15[%c0_35, %c0_36] : memref<1x128xf32, #tpu.memory_space<vmem>>, vector<1x128xf32>
    %45 = vector.broadcast %44 : vector<1x128xf32> to vector<32x128xf32>
    %46 = arith.addf %43, %45 : vector<32x128xf32>
    %47 = tpu.iota {dimensions = array<i32: 1>} : vector<32x128xi32>
    %c12_i32 = arith.constant 12 : i32
    %48 = vector.broadcast %c12_i32 : i32 to vector<32x128xi32>
    %49 = arith.cmpi slt, %47, %48 : vector<32x128xi32>
    %50 = arith.negf %46 : vector<32x128xf32>
    %51 = math.exp %50 : vector<32x128xf32>
    %cst_37 = arith.constant 1.000000e+00 : f32
    %52 = vector.broadcast %cst_37 : f32 to vector<32x128xf32>
    %53 = arith.addf %52, %51 : vector<32x128xf32>
    %54 = arith.divf %52, %53 : vector<32x128xf32>
    %55 = arith.select %49, %54, %46 : vector<32x128xi1>, vector<32x128xf32>
    %c0_38 = arith.constant 0 : index
    %c0_39 = arith.constant 0 : index
    %56 = vector.load %arg16[%c0_38, %c0_39] : memref<32x128xf32, #tpu.memory_space<vmem>>, vector<32x128xf32>
    tpu.vector_store %arg16[%c0_38, %c0_39], %55 {strides = array<i32>} : memref<32x128xf32, #tpu.memory_space<vmem>>, vector<32x128xf32>,
    return
  }
  func.func @transform_0(%arg0: i32) -> (i32, i32) {
    %c0_i32 = arith.constant 0 : i32
    %c0_i32_0 = arith.constant 0 : i32
    return %arg0, %c0_i32 : i32, i32
  }
  func.func @transform_1(%arg0: i32) -> (i32, i32) {
    %c0_i32 = arith.constant 0 : i32
    %c0_i32_0 = arith.constant 0 : i32
    return %arg0, %c0_i32 : i32, i32
  }
  func.func @transform_2(%arg0: i32) -> (i32, i32) {
    %c0_i32 = arith.constant 0 : i32
    %c0_i32_0 = arith.constant 0 : i32
    return %arg0, %c0_i32 : i32, i32
  }
  func.func @transform_3(%arg0: i32) -> (i32, i32) {
    %c0_i32 = arith.constant 0 : i32
    %c0_i32_0 = arith.constant 0 : i32
    %c0_i32_1 = arith.constant 0 : i32
    return %c0_i32, %c0_i32_0 : i32, i32
  }
  func.func @transform_4(%arg0: i32) -> (i32, i32) {
    %c0_i32 = arith.constant 0 : i32
    %c0_i32_0 = arith.constant 0 : i32
    %c0_i32_1 = arith.constant 0 : i32
    return %c0_i32, %c0_i32_0 : i32, i32
  }
  func.func @transform_5(%arg0: i32) -> (i32, i32) {
    %c0_i32 = arith.constant 0 : i32
    %c0_i32_0 = arith.constant 0 : i32
    %c0_i32_1 = arith.constant 0 : i32
    return %c0_i32, %c0_i32_0 : i32, i32
  }
  func.func @transform_6(%arg0: i32) -> (i32, i32) {
    %c0_i32 = arith.constant 0 : i32
    %c0_i32_0 = arith.constant 0 : i32
    %c0_i32_1 = arith.constant 0 : i32
    return %c0_i32, %c0_i32_0 : i32, i32
  }
  func.func @transform_7(%arg0: i32) -> (i32, i32) {
    %c0_i32 = arith.constant 0 : i32
    %c0_i32_0 = arith.constant 0 : i32
    %c0_i32_1 = arith.constant 0 : i32
    return %c0_i32, %c0_i32_0 : i32, i32
  }
  func.func @transform_8(%arg0: i32) -> (i32, i32) {
    %c0_i32 = arith.constant 0 : i32
    %c0_i32_0 = arith.constant 0 : i32
    %c0_i32_1 = arith.constant 0 : i32
    return %c0_i32, %c0_i32_0 : i32, i32
  }
  func.func @transform_9(%arg0: i32) -> (i32, i32) {
    %c0_i32 = arith.constant 0 : i32
    %c0_i32_0 = arith.constant 0 : i32
    %c0_i32_1 = arith.constant 0 : i32
    return %c0_i32, %c0_i32_0 : i32, i32
  }
  func.func @transform_10(%arg0: i32) -> (i32, i32) {
    %c0_i32 = arith.constant 0 : i32
    %c0_i32_0 = arith.constant 0 : i32
    %c0_i32_1 = arith.constant 0 : i32
    return %c0_i32, %c0_i32_0 : i32, i32
  }
  func.func @transform_11(%arg0: i32) -> (i32, i32) {
    %c0_i32 = arith.constant 0 : i32
    %c0_i32_0 = arith.constant 0 : i32
    %c0_i32_1 = arith.constant 0 : i32
    return %c0_i32, %c0_i32_0 : i32, i32
  }
  func.func @transform_12(%arg0: i32) -> (i32, i32) {
    %c0_i32 = arith.constant 0 : i32
    %c0_i32_0 = arith.constant 0 : i32
    %c0_i32_1 = arith.constant 0 : i32
    return %c0_i32, %c0_i32_0 : i32, i32
  }
  func.func @transform_13(%arg0: i32) -> (i32, i32) {
    %c0_i32 = arith.constant 0 : i32
    %c0_i32_0 = arith.constant 0 : i32
    %c0_i32_1 = arith.constant 0 : i32
    return %c0_i32, %c0_i32_0 : i32, i32
  }
  func.func @transform_14(%arg0: i32) -> (i32, i32) {
    %c0_i32 = arith.constant 0 : i32
    %c0_i32_0 = arith.constant 0 : i32
    %c0_i32_1 = arith.constant 0 : i32
    return %c0_i32, %c0_i32_0 : i32, i32
  }
  func.func @transform_15(%arg0: i32) -> (i32, i32) {
    %c0_i32 = arith.constant 0 : i32
    %c0_i32_0 = arith.constant 0 : i32
    return %arg0, %c0_i32 : i32, i32
  }
}

</mosaic_0001>

<llo_original>
// kernel: tpu_custom_call.1
$region0: #{tpu_custom_call.1}
  #allocation0 [shape = 'u32[]', space=smem, size = 0x4, offset = 0x4, fixed_abs, tag = 'smem constant byte address 0x4 - core index']
  #allocation1 [shape = 'u32[72,128]{1,0:T(1,128)}', space=vmem, size = 0x9000, scoped, tag = 'internal scratch']
  %s0 = inlined_call_operand.vmem [shape: bf16[32,768], index: 0, kind: input, shape index: {}]
  %s1 = inlined_call_operand.hbm [shape: f32[32,32], index: 1, kind: input, shape index: {}]
  %s2 = inlined_call_operand.hbm [shape: f32[32,136], index: 2, kind: input, shape index: {}]
  %s3 = inlined_call_operand.vmem [shape: bf16[768,32], index: 3, kind: input, shape index: {}]
  %s4 = inlined_call_operand.vmem [shape: f32[1,32], index: 4, kind: input, shape index: {}]
  %s5 = inlined_call_operand.hbm [shape: bf16[136,256], index: 5, kind: input, shape index: {}]
  %s6 = inlined_call_operand.vmem [shape: f32[1,256], index: 6, kind: input, shape index: {}]
  %s7 = inlined_call_operand.vmem [shape: bf16[256,256], index: 7, kind: input, shape index: {}]
  %s8 = inlined_call_operand.vmem [shape: f32[1,256], index: 8, kind: input, shape index: {}]
  %s9 = inlined_call_operand.vmem [shape: bf16[256,256], index: 9, kind: input, shape index: {}]
  %s10 = inlined_call_operand.vmem [shape: f32[1,256], index: 10, kind: input, shape index: {}]
  %s11 = inlined_call_operand.vmem [shape: bf16[224,32], index: 11, kind: input, shape index: {}]
  %s12 = inlined_call_operand.vmem [shape: f32[1,32], index: 12, kind: input, shape index: {}]
  %s13 = inlined_call_operand.hbm [shape: bf16[128,128], index: 13, kind: input, shape index: {}]
  %s14 = inlined_call_operand.vmem [shape: f32[1,128], index: 14, kind: input, shape index: {}]
  %s15 = inlined_call_operand.hbm [shape: f32[32,128], index: 15, kind: output, shape index: {}]
  %s16 = sld [smem:[#allocation0]]
  $region86: #{tpu_custom_call.1} parent=0
    _
  %s18 = ssub.s32 1, %s16
  %s19 = scalar_select 0, %s18, %s16
  $region1: #{tpu_custom_call.1} parent=0
    #allocation2 [shape = 'u8[16384]{0}', space=vmem, size = 0x4000, scoped, tag = 'input window, operand 1, single buffered']
    #allocation3 [shape = 's32[1]{0}', space=sflag, size = 0x4, scoped, tag = 'scoped memory for tpu_custom_call.1']
    #allocation4 [shape = 's32[1]{0}', space=sflag, size = 0x4, scoped, tag = 'scoped memory for tpu_custom_call.1']
    #allocation5 [shape = 'u8[32768]{0}', space=vmem, size = 0x8000, scoped, tag = 'input window, operand 2, single buffered']
    #allocation6 [shape = 's32[1]{0}', space=sflag, size = 0x4, scoped, tag = 'scoped memory for tpu_custom_call.1']
    #allocation7 [shape = 'u8[69632]{0}', space=vmem, size = 0x11000, scoped, tag = 'input window, operand 5, single buffered']
    #allocation8 [shape = 'u8[32768]{0}', space=vmem, size = 0x8000, scoped, tag = 'input window, operand 13, single buffered']
    #allocation9 [shape = 's32[1]{0}', space=sflag, size = 0x4, scoped, tag = 'scoped memory for tpu_custom_call.1']
    #allocation10 [shape = 'u8[16384]{0}', space=vmem, size = 0x4000, scoped, tag = 'output window, operand 0, single buffered']
    %20 = vsyncpa [#allocation3], 0
    %21 = vsyncpa [#allocation6], 0
    %22 = vsyncpa [#allocation9], 0
    %23 = vsyncpa [#allocation4], 0
    // Predicated region
    $region2: #{tpu_custom_call.1} parent=1 // pred_check
      _
    $region3: #{tpu_custom_call.1} parent=1 // pred_check_branch
      %25 = sbr.rel (0) target = $region5
    $region4: #{tpu_custom_call.1} parent=1 // pred_region
      _
    $region5: #{tpu_custom_call.1} parent=1 // pred_fallthru
      _
    // Predicated region
    $region6: #{tpu_custom_call.1} parent=1 // pred_check
      _
    $region7: #{tpu_custom_call.1} parent=1 // pred_check_branch
      %27 = sbr.rel (0) target = $region9
    $region8: #{tpu_custom_call.1} parent=1 // pred_region
      %29 = vsyncadd [#allocation3], 0
      %s30 = sshll.u32 %s1, 4
      %s31 = int_to_ptr.hbm [resolvable:$true] %s30
      %s32 = sshll.u32 [#allocation2], 4
      %s33 = int_to_ptr.vmem [resolvable:$true] %s32
      %38 = dma.hbm_to_vmem [thread:$0]  %s31, 512, %s33, [#allocation3], 128, 128, 8
    $region9: #{tpu_custom_call.1} parent=1 // pred_fallthru
      _
    // Predicated region
    $region10: #{tpu_custom_call.1} parent=1 // pred_check
      _
    $region11: #{tpu_custom_call.1} parent=1 // pred_check_branch
      %40 = sbr.rel (0) target = $region13
    $region12: #{tpu_custom_call.1} parent=1 // pred_region
      %42 = vsyncadd [#allocation6], 0
      %s43 = sshll.u32 %s2, 4
      %s44 = int_to_ptr.hbm [resolvable:$true] %s43
      %s45 = sshll.u32 [#allocation5], 4
      %s46 = int_to_ptr.vmem [resolvable:$true] %s45
      %51 = dma.hbm_to_vmem [thread:$0]  %s44, 1024, %s46, [#allocation6], 256, 256, 16
    $region13: #{tpu_custom_call.1} parent=1 // pred_fallthru
      _
    // Predicated region
    $region14: #{tpu_custom_call.1} parent=1 // pred_check
      _
    $region15: #{tpu_custom_call.1} parent=1 // pred_check_branch
      %53 = sbr.rel (0) target = $region17
    $region16: #{tpu_custom_call.1} parent=1 // pred_region
      _
    $region17: #{tpu_custom_call.1} parent=1 // pred_fallthru
      _
    // Predicated region
    $region18: #{tpu_custom_call.1} parent=1 // pred_check
      _
    $region19: #{tpu_custom_call.1} parent=1 // pred_check_branch
      %55 = sbr.rel (0) target = $region21
    $region20: #{tpu_custom_call.1} parent=1 // pred_region
      _
    $region21: #{tpu_custom_call.1} parent=1 // pred_fallthru
      _
    // Predicated region
    $region22: #{tpu_custom_call.1} parent=1 // pred_check
      _
    $region23: #{tpu_custom_call.1} parent=1 // pred_check_branch
      %57 = sbr.rel (0) target = $region25
    $region24: #{tpu_custom_call.1} parent=1 // pred_region
      %59 = vsyncadd [#allocation6], 0
      %s60 = sshll.u32 %s5, 4
      %s61 = int_to_ptr.hbm [resolvable:$true] %s60
      %s62 = sshll.u32 [#allocation7], 4
      %s63 = int_to_ptr.vmem [resolvable:$true] %s62
      %68 = dma.hbm_to_vmem [thread:$0]  %s61, 2176, %s63, [#allocation6], 128, 128, 8
    $region25: #{tpu_custom_call.1} parent=1 // pred_fallthru
      _
    // Predicated region
    $region26: #{tpu_custom_call.1} parent=1 // pred_check
      _
    $region27: #{tpu_custom_call.1} parent=1 // pred_check_branch
      %70 = sbr.rel (0) target = $region29
    $region28: #{tpu_custom_call.1} parent=1 // pred_region
      _
    $region29: #{tpu_custom_call.1} parent=1 // pred_fallthru
      _
    // Predicated region
    $region30: #{tpu_custom_call.1} parent=1 // pred_check
      _
    $region31: #{tpu_custom_call.1} parent=1 // pred_check_branch
      %72 = sbr.rel (0) target = $region33
    $region32: #{tpu_custom_call.1} parent=1 // pred_region
      _
    $region33: #{tpu_custom_call.1} parent=1 // pred_fallthru
      _
    // Predicated region
    $region34: #{tpu_custom_call.1} parent=1 // pred_check
      _
    $region35: #{tpu_custom_call.1} parent=1 // pred_check_branch
      %74 = sbr.rel (0) target = $region37
    $region36: #{tpu_custom_call.1} parent=1 // pred_region
      _
    $region37: #{tpu_custom_call.1} parent=1 // pred_fallthru
      _
    // Predicated region
    $region38: #{tpu_custom_call.1} parent=1 // pred_check
      _
    $region39: #{tpu_custom_call.1} parent=1 // pred_check_branch
      %76 = sbr.rel (0) target = $region41
    $region40: #{tpu_custom_call.1} parent=1 // pred_region
      _
    $region41: #{tpu_custom_call.1} parent=1 // pred_fallthru
      _
    // Predicated region
    $region42: #{tpu_custom_call.1} parent=1 // pred_check
      _
    $region43: #{tpu_custom_call.1} parent=1 // pred_check_branch
      %78 = sbr.rel (0) target = $region45
    $region44: #{tpu_custom_call.1} parent=1 // pred_region
      _
    $region45: #{tpu_custom_call.1} parent=1 // pred_fallthru
      _
    // Predicated region
    $region46: #{tpu_custom_call.1} parent=1 // pred_check
      _
    $region47: #{tpu_custom_call.1} parent=1 // pred_check_branch
      %80 = sbr.rel (0) target = $region49
    $region48: #{tpu_custom_call.1} parent=1 // pred_region
      _
    $region49: #{tpu_custom_call.1} parent=1 // pred_fallthru
      _
    // Predicated region
    $region50: #{tpu_custom_call.1} parent=1 // pred_check
      _
    $region51: #{tpu_custom_call.1} parent=1 // pred_check_branch
      %82 = sbr.rel (0) target = $region53
    $region52: #{tpu_custom_call.1} parent=1 // pred_region
      _
    $region53: #{tpu_custom_call.1} parent=1 // pred_fallthru
      _
    // Predicated region
    $region54: #{tpu_custom_call.1} parent=1 // pred_check
      _
    $region55: #{tpu_custom_call.1} parent=1 // pred_check_branch
      %84 = sbr.rel (0) target = $region57
    $region56: #{tpu_custom_call.1} parent=1 // pred_region
      %86 = vsyncadd [#allocation9], 0
      %s87 = sshll.u32 %s13, 4
      %s88 = int_to_ptr.hbm [resolvable:$true] %s87
      %s89 = sshll.u32 [#allocation8], 4
      %s90 = int_to_ptr.vmem [resolvable:$true] %s89
      %95 = dma.hbm_to_vmem [thread:$0]  %s88, 1024, %s90, [#allocation9], 64, 64, 4
    $region57: #{tpu_custom_call.1} parent=1 // pred_fallthru
      _
    // Predicated region
    $region58: #{tpu_custom_call.1} parent=1 // pred_check
      _
    $region59: #{tpu_custom_call.1} parent=1 // pred_check_branch
      %97 = sbr.rel (0) target = $region61
    $region60: #{tpu_custom_call.1} parent=1 // pred_region
      _
    $region61: #{tpu_custom_call.1} parent=1 // pred_fallthru
      _
    // Predicated region
    $region62: #{tpu_custom_call.1} parent=1 // pred_check
      _
    $region63: #{tpu_custom_call.1} parent=1 // pred_check_branch
      %99 = sbr.rel (0) target = $region65
    $region64: #{tpu_custom_call.1} parent=1 // pred_region
      %101 = dma.done [#allocation3], 512
    $region65: #{tpu_custom_call.1} parent=1 // pred_fallthru
      _
    // Predicated region
    $region66: #{tpu_custom_call.1} parent=1 // pred_check
      _
    $region67: #{tpu_custom_call.1} parent=1 // pred_check_branch
      %103 = sbr.rel (0) target = $region69
    $region68: #{tpu_custom_call.1} parent=1 // pred_region
      %105 = dma.done [#allocation6], 1024
    $region69: #{tpu_custom_call.1} parent=1 // pred_fallthru
      _
    // Predicated region
    $region70: #{tpu_custom_call.1} parent=1 // pred_check
      _
    $region71: #{tpu_custom_call.1} parent=1 // pred_check_branch
      %107 = sbr.rel (0) target = $region73
    $region72: #{tpu_custom_call.1} parent=1 // pred_region
      %109 = dma.done [#allocation6], 2176
    $region73: #{tpu_custom_call.1} parent=1 // pred_fallthru
      _
    // Predicated region
    $region74: #{tpu_custom_call.1} parent=1 // pred_check
      _
    $region75: #{tpu_custom_call.1} parent=1 // pred_check_branch
      %111 = sbr.rel (0) target = $region77
    $region76: #{tpu_custom_call.1} parent=1 // pred_region
      %113 = dma.done [#allocation9], 1024
    $region77: #{tpu_custom_call.1} parent=1 // pred_fallthru
      _
    %v115 = vld [vmem:[%s0] sm:$0xff]
    %v116 = vld [vmem:[%s0 + $0x8] sm:$0xff]
    %v117 = vld [vmem:[%s0 + $0x10] sm:$0xff]
    %v118 = vld [vmem:[%s0 + $0x18] sm:$0xff]
    %v119 = vld [vmem:[%s0 + $0x20] sm:$0xff]
    %v120 = vld [vmem:[%s0 + $0x28] sm:$0xff]
    %v121 = vld [vmem:[%s0 + $0x30] sm:$0xff]
    %v122 = vld [vmem:[%s0 + $0x38] sm:$0xff]
    %v123 = vld [vmem:[%s0 + $0x40] sm:$0xff]
    %v124 = vld [vmem:[%s0 + $0x48] sm:$0xff]
    %v125 = vld [vmem:[%s0 + $0x50] sm:$0xff]
    %v126 = vld [vmem:[%s0 + $0x58] sm:$0xff]
    %v127 = vld [vmem:[%s3] sm:$0xf]
    %v128 = vld [vmem:[%s3 + $0x4] sm:$0xf]
    %v129 = vld [vmem:[%s3 + $0x8] sm:$0xf]
    %v130 = vld [vmem:[%s3 + $0xc] sm:$0xf]
    %v131 = vld [vmem:[%s3 + $0x10] sm:$0xf]
    %v132 = vld [vmem:[%s3 + $0x14] sm:$0xf]
    %v133 = vld [vmem:[%s3 + $0x18] sm:$0xf]
    %v134 = vld [vmem:[%s3 + $0x1c] sm:$0xf]
    %v135 = vld [vmem:[%s3 + $0x20] sm:$0xf]
    %v136 = vld [vmem:[%s3 + $0x24] sm:$0xf]
    %v137 = vld [vmem:[%s3 + $0x28] sm:$0xf]
    %v138 = vld [vmem:[%s3 + $0x2c] sm:$0xf]
    %v139 = vld [vmem:[%s3 + $0x30] sm:$0xf]
    %v140 = vld [vmem:[%s3 + $0x34] sm:$0xf]
    %v141 = vld [vmem:[%s3 + $0x38] sm:$0xf]
    %v142 = vld [vmem:[%s3 + $0x3c] sm:$0xf]
    %v143 = vld [vmem:[%s3 + $0x40] sm:$0xf]
    %v144 = vld [vmem:[%s3 + $0x44] sm:$0xf]
    %v145 = vld [vmem:[%s3 + $0x48] sm:$0xf]
    %v146 = vld [vmem:[%s3 + $0x4c] sm:$0xf]
    %v147 = vld [vmem:[%s3 + $0x50] sm:$0xf]
    %v148 = vld [vmem:[%s3 + $0x54] sm:$0xf]
    %v149 = vld [vmem:[%s3 + $0x58] sm:$0xf]
    %v150 = vld [vmem:[%s3 + $0x5c] sm:$0xf]
    %v151 = vld [vmem:[%s3 + $0x60] sm:$0xf]
    %v152 = vld [vmem:[%s3 + $0x64] sm:$0xf]
    %v153 = vld [vmem:[%s3 + $0x68] sm:$0xf]
    %v154 = vld [vmem:[%s3 + $0x6c] sm:$0xf]
    %v155 = vld [vmem:[%s3 + $0x70] sm:$0xf]
    %v156 = vld [vmem:[%s3 + $0x74] sm:$0xf]
    %v157 = vld [vmem:[%s3 + $0x78] sm:$0xf]
    %v158 = vld [vmem:[%s3 + $0x7c] sm:$0xf]
    %v159 = vld [vmem:[%s3 + $0x80] sm:$0xf]
    %v160 = vld [vmem:[%s3 + $0x84] sm:$0xf]
    %v161 = vld [vmem:[%s3 + $0x88] sm:$0xf]
    %v162 = vld [vmem:[%s3 + $0x8c] sm:$0xf]
    %v163 = vld [vmem:[%s3 + $0x90] sm:$0xf]
    %v164 = vld [vmem:[%s3 + $0x94] sm:$0xf]
    %v165 = vld [vmem:[%s3 + $0x98] sm:$0xf]
    %v166 = vld [vmem:[%s3 + $0x9c] sm:$0xf]
    %v167 = vld [vmem:[%s3 + $0xa0] sm:$0xf]
    %v168 = vld [vmem:[%s3 + $0xa4] sm:$0xf]
    %v169 = vld [vmem:[%s3 + $0xa8] sm:$0xf]
    %v170 = vld [vmem:[%s3 + $0xac] sm:$0xf]
    %v171 = vld [vmem:[%s3 + $0xb0] sm:$0xf]
    %v172 = vld [vmem:[%s3 + $0xb4] sm:$0xf]
    %v173 = vld [vmem:[%s3 + $0xb8] sm:$0xf]
    %v174 = vld [vmem:[%s3 + $0xbc] sm:$0xf]
    %v175 = vld [vmem:[%s3 + $0xc0] sm:$0xf]
    %v176 = vld [vmem:[%s3 + $0xc4] sm:$0xf]
    %v177 = vld [vmem:[%s3 + $0xc8] sm:$0xf]
    %v178 = vld [vmem:[%s3 + $0xcc] sm:$0xf]
    %v179 = vld [vmem:[%s3 + $0xd0] sm:$0xf]
    %v180 = vld [vmem:[%s3 + $0xd4] sm:$0xf]
    %v181 = vld [vmem:[%s3 + $0xd8] sm:$0xf]
    %v182 = vld [vmem:[%s3 + $0xdc] sm:$0xf]
    %v183 = vld [vmem:[%s3 + $0xe0] sm:$0xf]
    %v184 = vld [vmem:[%s3 + $0xe4] sm:$0xf]
    %v185 = vld [vmem:[%s3 + $0xe8] sm:$0xf]
    %v186 = vld [vmem:[%s3 + $0xec] sm:$0xf]
    %v187 = vld [vmem:[%s3 + $0xf0] sm:$0xf]
    %v188 = vld [vmem:[%s3 + $0xf4] sm:$0xf]
    %v189 = vld [vmem:[%s3 + $0xf8] sm:$0xf]
    %v190 = vld [vmem:[%s3 + $0xfc] sm:$0xf]
    %v191 = vld [vmem:[%s3 + $0x100] sm:$0xf]
    %v192 = vld [vmem:[%s3 + $0x104] sm:$0xf]
    %v193 = vld [vmem:[%s3 + $0x108] sm:$0xf]
    %v194 = vld [vmem:[%s3 + $0x10c] sm:$0xf]
    %v195 = vld [vmem:[%s3 + $0x110] sm:$0xf]
    %v196 = vld [vmem:[%s3 + $0x114] sm:$0xf]
    %v197 = vld [vmem:[%s3 + $0x118] sm:$0xf]
    %v198 = vld [vmem:[%s3 + $0x11c] sm:$0xf]
    %v199 = vld [vmem:[%s3 + $0x120] sm:$0xf]
    %v200 = vld [vmem:[%s3 + $0x124] sm:$0xf]
    %v201 = vld [vmem:[%s3 + $0x128] sm:$0xf]
    %v202 = vld [vmem:[%s3 + $0x12c] sm:$0xf]
    %v203 = vld [vmem:[%s3 + $0x130] sm:$0xf]
    %v204 = vld [vmem:[%s3 + $0x134] sm:$0xf]
    %v205 = vld [vmem:[%s3 + $0x138] sm:$0xf]
    %v206 = vld [vmem:[%s3 + $0x13c] sm:$0xf]
    %v207 = vld [vmem:[%s3 + $0x140] sm:$0xf]
    %v208 = vld [vmem:[%s3 + $0x144] sm:$0xf]
    %v209 = vld [vmem:[%s3 + $0x148] sm:$0xf]
    %v210 = vld [vmem:[%s3 + $0x14c] sm:$0xf]
    %v211 = vld [vmem:[%s3 + $0x150] sm:$0xf]
    %v212 = vld [vmem:[%s3 + $0x154] sm:$0xf]
    %v213 = vld [vmem:[%s3 + $0x158] sm:$0xf]
    %v214 = vld [vmem:[%s3 + $0x15c] sm:$0xf]
    %v215 = vld [vmem:[%s3 + $0x160] sm:$0xf]
    %v216 = vld [vmem:[%s3 + $0x164] sm:$0xf]
    %v217 = vld [vmem:[%s3 + $0x168] sm:$0xf]
    %v218 = vld [vmem:[%s3 + $0x16c] sm:$0xf]
    %v219 = vld [vmem:[%s3 + $0x170] sm:$0xf]
    %v220 = vld [vmem:[%s3 + $0x174] sm:$0xf]
    %v221 = vld [vmem:[%s3 + $0x178] sm:$0xf]
    %v222 = vld [vmem:[%s3 + $0x17c] sm:$0xf]
    %v223 = vld [vmem:[%s4] sm:$0x1]
    %v225 = vperm.slane %v223, 0
    %v239 = vunpack.c.l.b16 %v115
    %v240 = vunpack.c.h.b16 %v115
    %v241 = vunpack.c.l.b16 %v116
    %v242 = vunpack.c.h.b16 %v116
    %v243 = vunpack.c.l.b16 %v117
    %v244 = vunpack.c.h.b16 %v117
    %v245 = vunpack.c.l.b16 %v118
    %v246 = vunpack.c.h.b16 %v118
    %v247 = vunpack.c.l.b16 %v119
    %v248 = vunpack.c.h.b16 %v119
    %v249 = vunpack.c.l.b16 %v120
    %v250 = vunpack.c.h.b16 %v120
    %v251 = vunpack.c.l.b16 %v121
    %v252 = vunpack.c.h.b16 %v121
    %v253 = vunpack.c.l.b16 %v122
    %v254 = vunpack.c.h.b16 %v122
    %v255 = vunpack.c.l.b16 %v123
    %v256 = vunpack.c.h.b16 %v123
    %v257 = vunpack.c.l.b16 %v124
    %v258 = vunpack.c.h.b16 %v124
    %v259 = vunpack.c.l.b16 %v125
    %v260 = vunpack.c.h.b16 %v125
    %v261 = vunpack.c.l.b16 %v126
    %v262 = vunpack.c.h.b16 %v126
    %v263 = vpack.c.b16 %v245, %v239
    %v264 = vpack.c.b16 %v246, %v240
    %v265 = vpack.c.b16 %v247, %v241
    %v266 = vpack.c.b16 %v248, %v242
    %v267 = vpack.c.b16 %v249, %v243
    %v268 = vpack.c.b16 %v250, %v244
    %v269 = vpack.c.b16 %v257, %v251
    %v270 = vpack.c.b16 %v258, %v252
    %v271 = vpack.c.b16 %v259, %v253
    %v272 = vpack.c.b16 %v260, %v254
    %v273 = vpack.c.b16 %v261, %v255
    %v274 = vpack.c.b16 %v262, %v256
    %v383 = vunpack.c.l.b16 %v127
    %v384 = vunpack.c.l.b16 %v128
    %v385 = vunpack.c.l.b16 %v129
    %v386 = vunpack.c.l.b16 %v130
    %v387 = vunpack.c.l.b16 %v131
    %v388 = vunpack.c.l.b16 %v132
    %v389 = vunpack.c.l.b16 %v133
    %v390 = vunpack.c.l.b16 %v134
    %v391 = vunpack.c.l.b16 %v135
    %v392 = vunpack.c.l.b16 %v136
    %v393 = vunpack.c.l.b16 %v137
    %v394 = vunpack.c.l.b16 %v138
    %v395 = vunpack.c.l.b16 %v139
    %v396 = vunpack.c.l.b16 %v140
    %v397 = vunpack.c.l.b16 %v141
    %v398 = vunpack.c.l.b16 %v142
    %v399 = vunpack.c.l.b16 %v143
    %v400 = vunpack.c.l.b16 %v144
    %v401 = vunpack.c.l.b16 %v145
    %v402 = vunpack.c.l.b16 %v146
    %v403 = vunpack.c.l.b16 %v147
    %v404 = vunpack.c.l.b16 %v148
    %v405 = vunpack.c.l.b16 %v149
    %v406 = vunpack.c.l.b16 %v150
    %v407 = vunpack.c.l.b16 %v151
    %v408 = vunpack.c.l.b16 %v152
    %v409 = vunpack.c.l.b16 %v153
    %v410 = vunpack.c.l.b16 %v154
    %v411 = vunpack.c.l.b16 %v155
    %v412 = vunpack.c.l.b16 %v156
    %v413 = vunpack.c.l.b16 %v157
    %v414 = vunpack.c.l.b16 %v158
    %v415 = vunpack.c.l.b16 %v159
    %v416 = vunpack.c.l.b16 %v160
    %v417 = vunpack.c.l.b16 %v161
    %v418 = vunpack.c.l.b16 %v162
    %v419 = vunpack.c.l.b16 %v163
    %v420 = vunpack.c.l.b16 %v164
    %v421 = vunpack.c.l.b16 %v165
    %v422 = vunpack.c.l.b16 %v166
    %v423 = vunpack.c.l.b16 %v167
    %v424 = vunpack.c.l.b16 %v168
    %v425 = vunpack.c.l.b16 %v169
    %v426 = vunpack.c.l.b16 %v170
    %v427 = vunpack.c.l.b16 %v171
    %v428 = vunpack.c.l.b16 %v172
    %v429 = vunpack.c.l.b16 %v173
    %v430 = vunpack.c.l.b16 %v174
    %v431 = vunpack.c.l.b16 %v175
    %v432 = vunpack.c.l.b16 %v176
    %v433 = vunpack.c.l.b16 %v177
    %v434 = vunpack.c.l.b16 %v178
    %v435 = vunpack.c.l.b16 %v179
    %v436 = vunpack.c.l.b16 %v180
    %v437 = vunpack.c.l.b16 %v181
    %v438 = vunpack.c.l.b16 %v182
    %v439 = vunpack.c.l.b16 %v183
    %v440 = vunpack.c.l.b16 %v184
    %v441 = vunpack.c.l.b16 %v185
    %v442 = vunpack.c.l.b16 %v186
    %v443 = vunpack.c.l.b16 %v187
    %v444 = vunpack.c.l.b16 %v188
    %v445 = vunpack.c.l.b16 %v189
    %v446 = vunpack.c.l.b16 %v190
    %v447 = vunpack.c.l.b16 %v191
    %v448 = vunpack.c.l.b16 %v192
    %v449 = vunpack.c.l.b16 %v193
    %v450 = vunpack.c.l.b16 %v194
    %v451 = vunpack.c.l.b16 %v195
    %v452 = vunpack.c.l.b16 %v196
    %v453 = vunpack.c.l.b16 %v197
    %v454 = vunpack.c.l.b16 %v198
    %v455 = vunpack.c.l.b16 %v199
    %v456 = vunpack.c.l.b16 %v200
    %v457 = vunpack.c.l.b16 %v201
    %v458 = vunpack.c.l.b16 %v202
    %v459 = vunpack.c.l.b16 %v203
    %v460 = vunpack.c.l.b16 %v204
    %v461 = vunpack.c.l.b16 %v205
    %v462 = vunpack.c.l.b16 %v206
    %v463 = vunpack.c.l.b16 %v207
    %v464 = vunpack.c.l.b16 %v208
    %v465 = vunpack.c.l.b16 %v209
    %v466 = vunpack.c.l.b16 %v210
    %v467 = vunpack.c.l.b16 %v211
    %v468 = vunpack.c.l.b16 %v212
    %v469 = vunpack.c.l.b16 %v213
    %v470 = vunpack.c.l.b16 %v214
    %v471 = vunpack.c.l.b16 %v215
    %v472 = vunpack.c.l.b16 %v216
    %v473 = vunpack.c.l.b16 %v217
    %v474 = vunpack.c.l.b16 %v218
    %v475 = vunpack.c.l.b16 %v219
    %v476 = vunpack.c.l.b16 %v220
    %v477 = vunpack.c.l.b16 %v221
    %v478 = vunpack.c.l.b16 %v222
    %v479 = vpack.c.b16 %v384, %v383
    %v480 = vpack.c.b16 %v386, %v385
    %v481 = vpack.c.b16 %v388, %v387
    %v482 = vpack.c.b16 %v390, %v389
    %v483 = vpack.c.b16 %v392, %v391
    %v484 = vpack.c.b16 %v394, %v393
    %v485 = vpack.c.b16 %v396, %v395
    %v486 = vpack.c.b16 %v398, %v397
    %v487 = vpack.c.b16 %v400, %v399
    %v488 = vpack.c.b16 %v402, %v401
    %v489 = vpack.c.b16 %v404, %v403
    %v490 = vpack.c.b16 %v406, %v405
    %v491 = vpack.c.b16 %v408, %v407
    %v492 = vpack.c.b16 %v410, %v409
    %v493 = vpack.c.b16 %v412, %v411
    %v494 = vpack.c.b16 %v414, %v413
    %v495 = vpack.c.b16 %v416, %v415
    %v496 = vpack.c.b16 %v418, %v417
    %v497 = vpack.c.b16 %v420, %v419
    %v498 = vpack.c.b16 %v422, %v421
    %v499 = vpack.c.b16 %v424, %v423
    %v500 = vpack.c.b16 %v426, %v425
    %v501 = vpack.c.b16 %v428, %v427
    %v502 = vpack.c.b16 %v430, %v429
    %v503 = vpack.c.b16 %v432, %v431
    %v504 = vpack.c.b16 %v434, %v433
    %v505 = vpack.c.b16 %v436, %v435
    %v506 = vpack.c.b16 %v438, %v437
    %v507 = vpack.c.b16 %v440, %v439
    %v508 = vpack.c.b16 %v442, %v441
    %v509 = vpack.c.b16 %v444, %v443
    %v510 = vpack.c.b16 %v446, %v445
    %v511 = vpack.c.b16 %v448, %v447
    %v512 = vpack.c.b16 %v450, %v449
    %v513 = vpack.c.b16 %v452, %v451
    %v514 = vpack.c.b16 %v454, %v453
    %v515 = vpack.c.b16 %v456, %v455
    %v516 = vpack.c.b16 %v458, %v457
    %v517 = vpack.c.b16 %v460, %v459
    %v518 = vpack.c.b16 %v462, %v461
    %v519 = vpack.c.b16 %v464, %v463
    %v520 = vpack.c.b16 %v466, %v465
    %v521 = vpack.c.b16 %v468, %v467
    %v522 = vpack.c.b16 %v470, %v469
    %v523 = vpack.c.b16 %v472, %v471
    %v524 = vpack.c.b16 %v474, %v473
    %v525 = vpack.c.b16 %v476, %v475
    %v526 = vpack.c.b16 %v478, %v477
    %575 = vmatpush.bf16.msra.mxu0 %v486
    %576 = vmatpush.bf16.msra.mxu0 %v485
    %577 = vmatpush.bf16.msra.mxu0 %v484
    %578 = vmatpush.bf16.msra.mxu0 %v483
    %579 = vmatpush.bf16.msra.mxu0 %v482
    %580 = vmatpush.bf16.msra.mxu0 %v481
    %581 = vmatpush.bf16.msra.mxu0 %v480
    %582 = vmatpush.bf16.msra.mxu0 %v479
    %583 = vmatmul.bf16.gmra.mxu0 %v263
    %v584 = vpop.f32.mrf.mxu0
    %v585 = vadd.f32 %v225, %v584
    %v586 = vpop.f32.mrf.mxu0
    %v587 = vadd.f32 %v225, %v586
    %588 = vmatmul.bf16.gmra.mxu0 %v269
    %v589 = vpop.f32.mrf.mxu0
    %v590 = vadd.f32 %v225, %v589
    %v591 = vpop.f32.mrf.mxu0
    %v592 = vadd.f32 %v225, %v591
    %593 = vdwg.mxu0
    %594 = vmatpush.bf16.msra.mxu0 %v494
    %595 = vmatpush.bf16.msra.mxu0 %v493
    %596 = vmatpush.bf16.msra.mxu0 %v492
    %597 = vmatpush.bf16.msra.mxu0 %v491
    %598 = vmatpush.bf16.msra.mxu0 %v490
    %599 = vmatpush.bf16.msra.mxu0 %v489
    %600 = vmatpush.bf16.msra.mxu0 %v488
    %601 = vmatpush.bf16.msra.mxu0 %v487
    %602 = vmatmul.bf16.gmra.mxu0 %v264
    %v603 = vpop.f32.mrf.mxu0
    %v604 = vadd.f32 %v585, %v603
    %v605 = vpop.f32.mrf.mxu0
    %v606 = vadd.f32 %v587, %v605
    %607 = vmatmul.bf16.gmra.mxu0 %v270
    %v608 = vpop.f32.mrf.mxu0
    %v609 = vadd.f32 %v590, %v608
    %v610 = vpop.f32.mrf.mxu0
    %v611 = vadd.f32 %v592, %v610
    %612 = vdwg.mxu0
    %613 = vmatpush.bf16.msra.mxu0 %v502
    %614 = vmatpush.bf16.msra.mxu0 %v501
    %615 = vmatpush.bf16.msra.mxu0 %v500
    %616 = vmatpush.bf16.msra.mxu0 %v499
    %617 = vmatpush.bf16.msra.mxu0 %v498
    %618 = vmatpush.bf16.msra.mxu0 %v497
    %619 = vmatpush.bf16.msra.mxu0 %v496
    %620 = vmatpush.bf16.msra.mxu0 %v495
    %621 = vmatmul.bf16.gmra.mxu0 %v265
    %v622 = vpop.f32.mrf.mxu0
    %v623 = vadd.f32 %v604, %v622
    %v624 = vpop.f32.mrf.mxu0
    %v625 = vadd.f32 %v606, %v624
    %626 = vmatmul.bf16.gmra.mxu0 %v271
    %v627 = vpop.f32.mrf.mxu0
    %v628 = vadd.f32 %v609, %v627
    %v629 = vpop.f32.mrf.mxu0
    %v630 = vadd.f32 %v611, %v629
    %631 = vdwg.mxu0
    %632 = vmatpush.bf16.msra.mxu0 %v510
    %633 = vmatpush.bf16.msra.mxu0 %v509
    %634 = vmatpush.bf16.msra.mxu0 %v508
    %635 = vmatpush.bf16.msra.mxu0 %v507
    %636 = vmatpush.bf16.msra.mxu0 %v506
    %637 = vmatpush.bf16.msra.mxu0 %v505
    %638 = vmatpush.bf16.msra.mxu0 %v504
    %639 = vmatpush.bf16.msra.mxu0 %v503
    %640 = vmatmul.bf16.gmra.mxu0 %v266
    %v641 = vpop.f32.mrf.mxu0
    %v642 = vadd.f32 %v623, %v641
    %v643 = vpop.f32.mrf.mxu0
    %v644 = vadd.f32 %v625, %v643
    %645 = vmatmul.bf16.gmra.mxu0 %v272
    %v646 = vpop.f32.mrf.mxu0
    %v647 = vadd.f32 %v628, %v646
    %v648 = vpop.f32.mrf.mxu0
    %v649 = vadd.f32 %v630, %v648
    %650 = vdwg.mxu0
    %651 = vmatpush.bf16.msra.mxu0 %v518
    %652 = vmatpush.bf16.msra.mxu0 %v517
    %653 = vmatpush.bf16.msra.mxu0 %v516
    %654 = vmatpush.bf16.msra.mxu0 %v515
    %655 = vmatpush.bf16.msra.mxu0 %v514
    %656 = vmatpush.bf16.msra.mxu0 %v513
    %657 = vmatpush.bf16.msra.mxu0 %v512
    %658 = vmatpush.bf16.msra.mxu0 %v511
    %659 = vmatmul.bf16.gmra.mxu0 %v267
    %v660 = vpop.f32.mrf.mxu0
    %v661 = vadd.f32 %v642, %v660
    %v662 = vpop.f32.mrf.mxu0
    %v663 = vadd.f32 %v644, %v662
    %664 = vmatmul.bf16.gmra.mxu0 %v273
    %v665 = vpop.f32.mrf.mxu0
    %v666 = vadd.f32 %v647, %v665
    %v667 = vpop.f32.mrf.mxu0
    %v668 = vadd.f32 %v649, %v667
    %669 = vdwg.mxu0
    %670 = vmatpush.bf16.msra.mxu0 %v526
    %671 = vmatpush.bf16.msra.mxu0 %v525
    %672 = vmatpush.bf16.msra.mxu0 %v524
    %673 = vmatpush.bf16.msra.mxu0 %v523
    %674 = vmatpush.bf16.msra.mxu0 %v522
    %675 = vmatpush.bf16.msra.mxu0 %v521
    %676 = vmatpush.bf16.msra.mxu0 %v520
    %677 = vmatpush.bf16.msra.mxu0 %v519
    %678 = vmatmul.bf16.gmra.mxu0 %v268
    %v679 = vpop.f32.mrf.mxu0
    %v680 = vadd.f32 %v661, %v679
    %v681 = vpop.f32.mrf.mxu0
    %v682 = vadd.f32 %v663, %v681
    %683 = vmatmul.bf16.gmra.mxu0 %v274
    %v684 = vpop.f32.mrf.mxu0
    %v685 = vadd.f32 %v666, %v684
    %v686 = vpop.f32.mrf.mxu0
    %v687 = vadd.f32 %v668, %v686
    %688 = vdwg.mxu0
    %v689 = vld [vmem:[#allocation5] sm:$0xff]
    %v690 = vld [vmem:[#allocation5 + $0x8] sm:$0xff]
    %v691 = vld [vmem:[#allocation5 + $0x10] sm:$0xff]
    %v692 = vld [vmem:[#allocation5 + $0x18] sm:$0xff]
    %v693 = vld [vmem:[#allocation5 + $0x20] sm:$0xff]
    %v694 = vld [vmem:[#allocation5 + $0x28] sm:$0xff]
    %v695 = vld [vmem:[#allocation5 + $0x30] sm:$0xff]
    %v696 = vld [vmem:[#allocation5 + $0x38] sm:$0xff]
    %v697 = vpack.c.bf16 %v691, %v689
    %v698 = vpack.c.bf16 %v692, %v690
    %v699 = vpack.c.bf16 %v695, %v693
    %v700 = vpack.c.bf16 %v696, %v694
    %v701 = vld [vmem:[#allocation7] sm:$0xff]
    %v702 = vld [vmem:[#allocation7 + $0x8] sm:$0xff]
    %v703 = vld [vmem:[#allocation7 + $0x10] sm:$0xff]
    %v704 = vld [vmem:[#allocation7 + $0x18] sm:$0xff]
    %v705 = vld [vmem:[#allocation7 + $0x20] sm:$0xff]
    %v706 = vld [vmem:[#allocation7 + $0x28] sm:$0xff]
    %v707 = vld [vmem:[#allocation7 + $0x30] sm:$0xff]
    %v708 = vld [vmem:[#allocation7 + $0x38] sm:$0xff]
    %v709 = vld [vmem:[#allocation7 + $0x40] sm:$0xff]
    %v710 = vld [vmem:[#allocation7 + $0x48] sm:$0xff]
    %v711 = vld [vmem:[#allocation7 + $0x50] sm:$0xff]
    %v712 = vld [vmem:[#allocation7 + $0x58] sm:$0xff]
    %v713 = vld [vmem:[#allocation7 + $0x60] sm:$0xff]
    %v714 = vld [vmem:[#allocation7 + $0x68] sm:$0xff]
    %v715 = vld [vmem:[#allocation7 + $0x70] sm:$0xff]
    %v716 = vld [vmem:[#allocation7 + $0x78] sm:$0xff]
    %v717 = vld [vmem:[#allocation7 + $0x80] sm:$0xff]
    %v718 = vld [vmem:[%s6] sm:$0x3]
    %v720 = vperm.slane %v718, 0
    %v721 = vperm.slane %v718, 1
    %v741 = vunpack.c.l.b16 %v701
    %v742 = vunpack.c.h.b16 %v701
    %v743 = vunpack.c.l.b16 %v702
    %v744 = vunpack.c.h.b16 %v702
    %v745 = vunpack.c.l.b16 %v703
    %v746 = vunpack.c.h.b16 %v703
    %v747 = vunpack.c.l.b16 %v704
    %v748 = vunpack.c.h.b16 %v704
    %v749 = vunpack.c.l.b16 %v705
    %v750 = vunpack.c.h.b16 %v705
    %v751 = vunpack.c.l.b16 %v706
    %v752 = vunpack.c.h.b16 %v706
    %v753 = vunpack.c.l.b16 %v707
    %v754 = vunpack.c.h.b16 %v707
    %v755 = vunpack.c.l.b16 %v708
    %v756 = vunpack.c.h.b16 %v708
    %v757 = vunpack.c.l.b16 %v709
    %v758 = vunpack.c.h.b16 %v709
    %v759 = vunpack.c.l.b16 %v710
    %v760 = vunpack.c.h.b16 %v710
    %v761 = vunpack.c.l.b16 %v711
    %v762 = vunpack.c.h.b16 %v711
    %v763 = vunpack.c.l.b16 %v712
    %v764 = vunpack.c.h.b16 %v712
    %v765 = vunpack.c.l.b16 %v713
    %v766 = vunpack.c.h.b16 %v713
    %v767 = vunpack.c.l.b16 %v714
    %v768 = vunpack.c.h.b16 %v714
    %v769 = vunpack.c.l.b16 %v715
    %v770 = vunpack.c.h.b16 %v715
    %v771 = vunpack.c.l.b16 %v716
    %v772 = vunpack.c.h.b16 %v716
    %v773 = vunpack.c.l.b16 %v717
    %v774 = vunpack.c.h.b16 %v717
    %v775 = vpack.c.b16 %v743, %v741
    %v776 = vpack.c.b16 %v744, %v742
    %v777 = vpack.c.b16 %v747, %v745
    %v778 = vpack.c.b16 %v748, %v746
    %v779 = vpack.c.b16 %v751, %v749
    %v780 = vpack.c.b16 %v752, %v750
    %v781 = vpack.c.b16 %v755, %v753
    %v782 = vpack.c.b16 %v756, %v754
    %v783 = vpack.c.b16 %v759, %v757
    %v784 = vpack.c.b16 %v760, %v758
    %v785 = vpack.c.b16 %v763, %v761
    %v786 = vpack.c.b16 %v764, %v762
    %v787 = vpack.c.b16 %v767, %v765
    %v788 = vpack.c.b16 %v768, %v766
    %v789 = vpack.c.b16 %v771, %v769
    %v790 = vpack.c.b16 %v772, %v770
    %v791 = vpack.c.b16 %v773, %v773
    %v792 = vpack.c.b16 %v774, %v774
    %vm809 = vcmask 64512
    %v811 = vsel %vm809, %v698, 0
    %v814 = vsel %vm809, %v700, 0
    %vm816 = vcmask 1043456
    %v818 = vsel %vm816, %v791, 0
    %v821 = vsel %vm816, %v792, 0
    %823 = vmatpush.bf16.msra.mxu0 %v789
    %824 = vmatpush.bf16.msra.mxu0 %v787
    %825 = vmatpush.bf16.msra.mxu0 %v785
    %826 = vmatpush.bf16.msra.mxu0 %v783
    %827 = vmatpush.bf16.msra.mxu0 %v781
    %828 = vmatpush.bf16.msra.mxu0 %v779
    %829 = vmatpush.bf16.msra.mxu0 %v777
    %830 = vmatpush.bf16.msra.mxu0 %v775
    %831 = vmatmul.bf16.gmra.mxu0 %v697
    %v832 = vpop.f32.mrf.mxu0
    %v833 = vadd.f32 %v720, %v832
    %v834 = vpop.f32.mrf.mxu0
    %v835 = vadd.f32 %v720, %v834
    %836 = vmatmul.bf16.gmra.mxu0 %v699
    %v837 = vpop.f32.mrf.mxu0
    %v838 = vadd.f32 %v720, %v837
    %v839 = vpop.f32.mrf.mxu0
    %v840 = vadd.f32 %v720, %v839
    %841 = vdwg.mxu0
    %842 = vmatpush.bf16.msra.mxu0 0
    %843 = vmatpush.bf16.msra.mxu0 0
    %844 = vmatpush.bf16.msra.mxu0 0
    %845 = vmatpush.bf16.msra.mxu0 0
    %846 = vmatpush.bf16.msra.mxu0 0
    %847 = vmatpush.bf16.msra.mxu0 0
    %848 = vmatpush.bf16.msra.mxu0 0
    %849 = vmatpush.bf16.msra.mxu0 %v818
    %850 = vmatmul.bf16.gmra.mxu0 %v811
    %v851 = vpop.f32.mrf.mxu0
    %v852 = vadd.f32 %v833, %v851
    %v853 = vpop.f32.mrf.mxu0
    %v854 = vadd.f32 %v835, %v853
    %855 = vmatmul.bf16.gmra.mxu0 %v814
    %v856 = vpop.f32.mrf.mxu0
    %v857 = vadd.f32 %v838, %v856
    %v858 = vpop.f32.mrf.mxu0
    %v859 = vadd.f32 %v840, %v858
    %860 = vdwg.mxu0
    %861 = vmatpush.bf16.msra.mxu0 %v790
    %862 = vmatpush.bf16.msra.mxu0 %v788
    %863 = vmatpush.bf16.msra.mxu0 %v786
    %864 = vmatpush.bf16.msra.mxu0 %v784
    %865 = vmatpush.bf16.msra.mxu0 %v782
    %866 = vmatpush.bf16.msra.mxu0 %v780
    %867 = vmatpush.bf16.msra.mxu0 %v778
    %868 = vmatpush.bf16.msra.mxu0 %v776
    %869 = vmatmul.bf16.gmra.mxu0 %v697
    %v870 = vpop.f32.mrf.mxu0
    %v871 = vadd.f32 %v721, %v870
    %v872 = vpop.f32.mrf.mxu0
    %v873 = vadd.f32 %v721, %v872
    %874 = vmatmul.bf16.gmra.mxu0 %v699
    %v875 = vpop.f32.mrf.mxu0
    %v876 = vadd.f32 %v721, %v875
    %v877 = vpop.f32.mrf.mxu0
    %v878 = vadd.f32 %v721, %v877
    %879 = vdwg.mxu0
    %880 = vmatpush.bf16.msra.mxu0 0
    %881 = vmatpush.bf16.msra.mxu0 0
    %882 = vmatpush.bf16.msra.mxu0 0
    %883 = vmatpush.bf16.msra.mxu0 0
    %884 = vmatpush.bf16.msra.mxu0 0
    %885 = vmatpush.bf16.msra.mxu0 0
    %886 = vmatpush.bf16.msra.mxu0 0
    %887 = vmatpush.bf16.msra.mxu0 %v821
    %888 = vmatmul.bf16.gmra.mxu0 %v811
    %v889 = vpop.f32.mrf.mxu0
    %v890 = vadd.f32 %v871, %v889
    %v891 = vpop.f32.mrf.mxu0
    %v892 = vadd.f32 %v873, %v891
    %893 = vmatmul.bf16.gmra.mxu0 %v814
    %v894 = vpop.f32.mrf.mxu0
    %v895 = vadd.f32 %v876, %v894
    %v896 = vpop.f32.mrf.mxu0
    %v897 = vadd.f32 %v878, %v896
    %898 = vdwg.mxu0
    %v899 = vmax.f32 %v852, 0.0
    %v900 = vmax.f32 %v890, 0.0
    %v901 = vmax.f32 %v854, 0.0
    %v902 = vmax.f32 %v892, 0.0
    %v903 = vmax.f32 %v857, 0.0
    %v904 = vmax.f32 %v895, 0.0
    %v905 = vmax.f32 %v859, 0.0
    %v906 = vmax.f32 %v897, 0.0
    %v907 = vpack.c.bf16 %v901, %v899
    %v908 = vpack.c.bf16 %v902, %v900
    %v909 = vpack.c.bf16 %v905, %v903
    %v910 = vpack.c.bf16 %v906, %v904
    %v911 = vld [vmem:[%s7] sm:$0xff]
    %v912 = vld [vmem:[%s7 + $0x8] sm:$0xff]
    %v913 = vld [vmem:[%s7 + $0x10] sm:$0xff]
    %v914 = vld [vmem:[%s7 + $0x18] sm:$0xff]
    %v915 = vld [vmem:[%s7 + $0x20] sm:$0xff]
    %v916 = vld [vmem:[%s7 + $0x28] sm:$0xff]
    %v917 = vld [vmem:[%s7 + $0x30] sm:$0xff]
    %v918 = vld [vmem:[%s7 + $0x38] sm:$0xff]
    %v919 = vld [vmem:[%s7 + $0x40] sm:$0xff]
    %v920 = vld [vmem:[%s7 + $0x48] sm:$0xff]
    %v921 = vld [vmem:[%s7 + $0x50] sm:$0xff]
    %v922 = vld [vmem:[%s7 + $0x58] sm:$0xff]
    %v923 = vld [vmem:[%s7 + $0x60] sm:$0xff]
    %v924 = vld [vmem:[%s7 + $0x68] sm:$0xff]
    %v925 = vld [vmem:[%s7 + $0x70] sm:$0xff]
    %v926 = vld [vmem:[%s7 + $0x78] sm:$0xff]
    %v927 = vld [vmem:[%s7 + $0x80] sm:$0xff]
    %v928 = vld [vmem:[%s7 + $0x88] sm:$0xff]
    %v929 = vld [vmem:[%s7 + $0x90] sm:$0xff]
    %v930 = vld [vmem:[%s7 + $0x98] sm:$0xff]
    %v931 = vld [vmem:[%s7 + $0xa0] sm:$0xff]
    %v932 = vld [vmem:[%s7 + $0xa8] sm:$0xff]
    %v933 = vld [vmem:[%s7 + $0xb0] sm:$0xff]
    %v934 = vld [vmem:[%s7 + $0xb8] sm:$0xff]
    %v935 = vld [vmem:[%s7 + $0xc0] sm:$0xff]
    %v936 = vld [vmem:[%s7 + $0xc8] sm:$0xff]
    %v937 = vld [vmem:[%s7 + $0xd0] sm:$0xff]
    %v938 = vld [vmem:[%s7 + $0xd8] sm:$0xff]
    %v939 = vld [vmem:[%s7 + $0xe0] sm:$0xff]
    %v940 = vld [vmem:[%s7 + $0xe8] sm:$0xff]
    %v941 = vld [vmem:[%s7 + $0xf0] sm:$0xff]
    %v942 = vld [vmem:[%s7 + $0xf8] sm:$0xff]
    %v943 = vld [vmem:[%s8] sm:$0x3]
    %v945 = vperm.slane %v943, 0
    %v946 = vperm.slane %v943, 1
    %v981 = vunpack.c.l.b16 %v911
    %v982 = vunpack.c.h.b16 %v911
    %v983 = vunpack.c.l.b16 %v912
    %v984 = vunpack.c.h.b16 %v912
    %v985 = vunpack.c.l.b16 %v913
    %v986 = vunpack.c.h.b16 %v913
    %v987 = vunpack.c.l.b16 %v914
    %v988 = vunpack.c.h.b16 %v914
    %v989 = vunpack.c.l.b16 %v915
    %v990 = vunpack.c.h.b16 %v915
    %v991 = vunpack.c.l.b16 %v916
    %v992 = vunpack.c.h.b16 %v916
    %v993 = vunpack.c.l.b16 %v917
    %v994 = vunpack.c.h.b16 %v917
    %v995 = vunpack.c.l.b16 %v918
    %v996 = vunpack.c.h.b16 %v918
    %v997 = vunpack.c.l.b16 %v919
    %v998 = vunpack.c.h.b16 %v919
    %v999 = vunpack.c.l.b16 %v920
    %v1000 = vunpack.c.h.b16 %v920
    %v1001 = vunpack.c.l.b16 %v921
    %v1002 = vunpack.c.h.b16 %v921
    %v1003 = vunpack.c.l.b16 %v922
    %v1004 = vunpack.c.h.b16 %v922
    %v1005 = vunpack.c.l.b16 %v923
    %v1006 = vunpack.c.h.b16 %v923
    %v1007 = vunpack.c.l.b16 %v924
    %v1008 = vunpack.c.h.b16 %v924
    %v1009 = vunpack.c.l.b16 %v925
    %v1010 = vunpack.c.h.b16 %v925
    %v1011 = vunpack.c.l.b16 %v926
    %v1012 = vunpack.c.h.b16 %v926
    %v1013 = vunpack.c.l.b16 %v927
    %v1014 = vunpack.c.h.b16 %v927
    %v1015 = vunpack.c.l.b16 %v928
    %v1016 = vunpack.c.h.b16 %v928
    %v1017 = vunpack.c.l.b16 %v929
    %v1018 = vunpack.c.h.b16 %v929
    %v1019 = vunpack.c.l.b16 %v930
    %v1020 = vunpack.c.h.b16 %v930
    %v1021 = vunpack.c.l.b16 %v931
    %v1022 = vunpack.c.h.b16 %v931
    %v1023 = vunpack.c.l.b16 %v932
    %v1024 = vunpack.c.h.b16 %v932
    %v1025 = vunpack.c.l.b16 %v933
    %v1026 = vunpack.c.h.b16 %v933
    %v1027 = vunpack.c.l.b16 %v934
    %v1028 = vunpack.c.h.b16 %v934
    %v1029 = vunpack.c.l.b16 %v935
    %v1030 = vunpack.c.h.b16 %v935
    %v1031 = vunpack.c.l.b16 %v936
    %v1032 = vunpack.c.h.b16 %v936
    %v1033 = vunpack.c.l.b16 %v937
    %v1034 = vunpack.c.h.b16 %v937
    %v1035 = vunpack.c.l.b16 %v938
    %v1036 = vunpack.c.h.b16 %v938
    %v1037 = vunpack.c.l.b16 %v939
    %v1038 = vunpack.c.h.b16 %v939
    %v1039 = vunpack.c.l.b16 %v940
    %v1040 = vunpack.c.h.b16 %v940
    %v1041 = vunpack.c.l.b16 %v941
    %v1042 = vunpack.c.h.b16 %v941
    %v1043 = vunpack.c.l.b16 %v942
    %v1044 = vunpack.c.h.b16 %v942
    %v1045 = vpack.c.b16 %v983, %v981
    %v1046 = vpack.c.b16 %v984, %v982
    %v1047 = vpack.c.b16 %v987, %v985
    %v1048 = vpack.c.b16 %v988, %v986
    %v1049 = vpack.c.b16 %v991, %v989
    %v1050 = vpack.c.b16 %v992, %v990
    %v1051 = vpack.c.b16 %v995, %v993
    %v1052 = vpack.c.b16 %v996, %v994
    %v1053 = vpack.c.b16 %v999, %v997
    %v1054 = vpack.c.b16 %v1000, %v998
    %v1055 = vpack.c.b16 %v1003, %v1001
    %v1056 = vpack.c.b16 %v1004, %v1002
    %v1057 = vpack.c.b16 %v1007, %v1005
    %v1058 = vpack.c.b16 %v1008, %v1006
    %v1059 = vpack.c.b16 %v1011, %v1009
    %v1060 = vpack.c.b16 %v1012, %v1010
    %v1061 = vpack.c.b16 %v1015, %v1013
    %v1062 = vpack.c.b16 %v1016, %v1014
    %v1063 = vpack.c.b16 %v1019, %v1017
    %v1064 = vpack.c.b16 %v1020, %v1018
    %v1065 = vpack.c.b16 %v1023, %v1021
    %v1066 = vpack.c.b16 %v1024, %v1022
    %v1067 = vpack.c.b16 %v1027, %v1025
    %v1068 = vpack.c.b16 %v1028, %v1026
    %v1069 = vpack.c.b16 %v1031, %v1029
    %v1070 = vpack.c.b16 %v1032, %v1030
    %v1071 = vpack.c.b16 %v1035, %v1033
    %v1072 = vpack.c.b16 %v1036, %v1034
    %v1073 = vpack.c.b16 %v1039, %v1037
    %v1074 = vpack.c.b16 %v1040, %v1038
    %v1075 = vpack.c.b16 %v1043, %v1041
    %v1076 = vpack.c.b16 %v1044, %v1042
    %1109 = vmatpush.bf16.msra.mxu0 %v1059
    %1110 = vmatpush.bf16.msra.mxu0 %v1057
    %1111 = vmatpush.bf16.msra.mxu0 %v1055
    %1112 = vmatpush.bf16.msra.mxu0 %v1053
    %1113 = vmatpush.bf16.msra.mxu0 %v1051
    %1114 = vmatpush.bf16.msra.mxu0 %v1049
    %1115 = vmatpush.bf16.msra.mxu0 %v1047
    %1116 = vmatpush.bf16.msra.mxu0 %v1045
    %1117 = vmatmul.bf16.gmra.mxu0 %v907
    %v1118 = vpop.f32.mrf.mxu0
    %v1119 = vadd.f32 %v945, %v1118
    %v1120 = vpop.f32.mrf.mxu0
    %v1121 = vadd.f32 %v945, %v1120
    %1122 = vmatmul.bf16.gmra.mxu0 %v909
    %v1123 = vpop.f32.mrf.mxu0
    %v1124 = vadd.f32 %v945, %v1123
    %v1125 = vpop.f32.mrf.mxu0
    %v1126 = vadd.f32 %v945, %v1125
    %1127 = vdwg.mxu0
    %1128 = vmatpush.bf16.msra.mxu0 %v1075
    %1129 = vmatpush.bf16.msra.mxu0 %v1073
    %1130 = vmatpush.bf16.msra.mxu0 %v1071
    %1131 = vmatpush.bf16.msra.mxu0 %v1069
    %1132 = vmatpush.bf16.msra.mxu0 %v1067
    %1133 = vmatpush.bf16.msra.mxu0 %v1065
    %1134 = vmatpush.bf16.msra.mxu0 %v1063
    %1135 = vmatpush.bf16.msra.mxu0 %v1061
    %1136 = vmatmul.bf16.gmra.mxu0 %v908
    %v1137 = vpop.f32.mrf.mxu0
    %v1138 = vadd.f32 %v1119, %v1137
    %v1139 = vpop.f32.mrf.mxu0
    %v1140 = vadd.f32 %v1121, %v1139
    %1141 = vmatmul.bf16.gmra.mxu0 %v910
    %v1142 = vpop.f32.mrf.mxu0
    %v1143 = vadd.f32 %v1124, %v1142
    %v1144 = vpop.f32.mrf.mxu0
    %v1145 = vadd.f32 %v1126, %v1144
    %1146 = vdwg.mxu0
    %1147 = vmatpush.bf16.msra.mxu0 %v1060
    %1148 = vmatpush.bf16.msra.mxu0 %v1058
    %1149 = vmatpush.bf16.msra.mxu0 %v1056
    %1150 = vmatpush.bf16.msra.mxu0 %v1054
    %1151 = vmatpush.bf16.msra.mxu0 %v1052
    %1152 = vmatpush.bf16.msra.mxu0 %v1050
    %1153 = vmatpush.bf16.msra.mxu0 %v1048
    %1154 = vmatpush.bf16.msra.mxu0 %v1046
    %1155 = vmatmul.bf16.gmra.mxu0 %v907
    %v1156 = vpop.f32.mrf.mxu0
    %v1157 = vadd.f32 %v946, %v1156
    %v1158 = vpop.f32.mrf.mxu0
    %v1159 = vadd.f32 %v946, %v1158
    %1160 = vmatmul.bf16.gmra.mxu0 %v909
    %v1161 = vpop.f32.mrf.mxu0
    %v1162 = vadd.f32 %v946, %v1161
    %v1163 = vpop.f32.mrf.mxu0
    %v1164 = vadd.f32 %v946, %v1163
    %1165 = vdwg.mxu0
    %1166 = vmatpush.bf16.msra.mxu0 %v1076
    %1167 = vmatpush.bf16.msra.mxu0 %v1074
    %1168 = vmatpush.bf16.msra.mxu0 %v1072
    %1169 = vmatpush.bf16.msra.mxu0 %v1070
    %1170 = vmatpush.bf16.msra.mxu0 %v1068
    %1171 = vmatpush.bf16.msra.mxu0 %v1066
    %1172 = vmatpush.bf16.msra.mxu0 %v1064
    %1173 = vmatpush.bf16.msra.mxu0 %v1062
    %1174 = vmatmul.bf16.gmra.mxu0 %v908
    %v1175 = vpop.f32.mrf.mxu0
    %v1176 = vadd.f32 %v1157, %v1175
    %v1177 = vpop.f32.mrf.mxu0
    %v1178 = vadd.f32 %v1159, %v1177
    %1179 = vmatmul.bf16.gmra.mxu0 %v910
    %v1180 = vpop.f32.mrf.mxu0
    %v1181 = vadd.f32 %v1162, %v1180
    %v1182 = vpop.f32.mrf.mxu0
    %v1183 = vadd.f32 %v1164, %v1182
    %1184 = vdwg.mxu0
    %v1185 = vmax.f32 %v1138, 0.0
    %v1186 = vmax.f32 %v1176, 0.0
    %v1187 = vmax.f32 %v1140, 0.0
    %v1188 = vmax.f32 %v1178, 0.0
    %v1189 = vmax.f32 %v1143, 0.0
    %v1190 = vmax.f32 %v1181, 0.0
    %v1191 = vmax.f32 %v1145, 0.0
    %v1192 = vmax.f32 %v1183, 0.0
    %v1193 = vpack.c.bf16 %v1187, %v1185
    %v1194 = vpack.c.bf16 %v1188, %v1186
    %v1195 = vpack.c.bf16 %v1191, %v1189
    %v1196 = vpack.c.bf16 %v1192, %v1190
    %v1197 = vld [vmem:[%s9] sm:$0xff]
    %v1198 = vld [vmem:[%s9 + $0x8] sm:$0xff]
    %v1199 = vld [vmem:[%s9 + $0x10] sm:$0xff]
    %v1200 = vld [vmem:[%s9 + $0x18] sm:$0xff]
    %v1201 = vld [vmem:[%s9 + $0x20] sm:$0xff]
    %v1202 = vld [vmem:[%s9 + $0x28] sm:$0xff]
    %v1203 = vld [vmem:[%s9 + $0x30] sm:$0xff]
    %v1204 = vld [vmem:[%s9 + $0x38] sm:$0xff]
    %v1205 = vld [vmem:[%s9 + $0x40] sm:$0xff]
    %v1206 = vld [vmem:[%s9 + $0x48] sm:$0xff]
    %v1207 = vld [vmem:[%s9 + $0x50] sm:$0xff]
    %v1208 = vld [vmem:[%s9 + $0x58] sm:$0xff]
    %v1209 = vld [vmem:[%s9 + $0x60] sm:$0xff]
    %v1210 = vld [vmem:[%s9 + $0x68] sm:$0xff]
    %v1211 = vld [vmem:[%s9 + $0x70] sm:$0xff]
    %v1212 = vld [vmem:[%s9 + $0x78] sm:$0xff]
    %v1213 = vld [vmem:[%s9 + $0x80] sm:$0xff]
    %v1214 = vld [vmem:[%s9 + $0x88] sm:$0xff]
    %v1215 = vld [vmem:[%s9 + $0x90] sm:$0xff]
    %v1216 = vld [vmem:[%s9 + $0x98] sm:$0xff]
    %v1217 = vld [vmem:[%s9 + $0xa0] sm:$0xff]
    %v1218 = vld [vmem:[%s9 + $0xa8] sm:$0xff]
    %v1219 = vld [vmem:[%s9 + $0xb0] sm:$0xff]
    %v1220 = vld [vmem:[%s9 + $0xb8] sm:$0xff]
    %v1221 = vld [vmem:[%s9 + $0xc0] sm:$0xff]
    %v1222 = vld [vmem:[%s9 + $0xc8] sm:$0xff]
    %v1223 = vld [vmem:[%s9 + $0xd0] sm:$0xff]
    %v1224 = vld [vmem:[%s9 + $0xd8] sm:$0xff]
    %v1225 = vld [vmem:[%s9 + $0xe0] sm:$0xff]
    %v1226 = vld [vmem:[%s9 + $0xe8] sm:$0xff]
    %v1227 = vld [vmem:[%s9 + $0xf0] sm:$0xff]
    %v1228 = vld [vmem:[%s9 + $0xf8] sm:$0xff]
    %v1229 = vld [vmem:[%s10] sm:$0x3]
    %v1231 = vperm.slane %v1229, 0
    %v1232 = vperm.slane %v1229, 1
    %v1267 = vunpack.c.l.b16 %v1197
    %v1268 = vunpack.c.h.b16 %v1197
    %v1269 = vunpack.c.l.b16 %v1198
    %v1270 = vunpack.c.h.b16 %v1198
    %v1271 = vunpack.c.l.b16 %v1199
    %v1272 = vunpack.c.h.b16 %v1199
    %v1273 = vunpack.c.l.b16 %v1200
    %v1274 = vunpack.c.h.b16 %v1200
    %v1275 = vunpack.c.l.b16 %v1201
    %v1276 = vunpack.c.h.b16 %v1201
    %v1277 = vunpack.c.l.b16 %v1202
    %v1278 = vunpack.c.h.b16 %v1202
    %v1279 = vunpack.c.l.b16 %v1203
    %v1280 = vunpack.c.h.b16 %v1203
    %v1281 = vunpack.c.l.b16 %v1204
    %v1282 = vunpack.c.h.b16 %v1204
    %v1283 = vunpack.c.l.b16 %v1205
    %v1284 = vunpack.c.h.b16 %v1205
    %v1285 = vunpack.c.l.b16 %v1206
    %v1286 = vunpack.c.h.b16 %v1206
    %v1287 = vunpack.c.l.b16 %v1207
    %v1288 = vunpack.c.h.b16 %v1207
    %v1289 = vunpack.c.l.b16 %v1208
    %v1290 = vunpack.c.h.b16 %v1208
    %v1291 = vunpack.c.l.b16 %v1209
    %v1292 = vunpack.c.h.b16 %v1209
    %v1293 = vunpack.c.l.b16 %v1210
    %v1294 = vunpack.c.h.b16 %v1210
    %v1295 = vunpack.c.l.b16 %v1211
    %v1296 = vunpack.c.h.b16 %v1211
    %v1297 = vunpack.c.l.b16 %v1212
    %v1298 = vunpack.c.h.b16 %v1212
    %v1299 = vunpack.c.l.b16 %v1213
    %v1300 = vunpack.c.h.b16 %v1213
    %v1301 = vunpack.c.l.b16 %v1214
    %v1302 = vunpack.c.h.b16 %v1214
    %v1303 = vunpack.c.l.b16 %v1215
    %v1304 = vunpack.c.h.b16 %v1215
    %v1305 = vunpack.c.l.b16 %v1216
    %v1306 = vunpack.c.h.b16 %v1216
    %v1307 = vunpack.c.l.b16 %v1217
    %v1308 = vunpack.c.h.b16 %v1217
    %v1309 = vunpack.c.l.b16 %v1218
    %v1310 = vunpack.c.h.b16 %v1218
    %v1311 = vunpack.c.l.b16 %v1219
    %v1312 = vunpack.c.h.b16 %v1219
    %v1313 = vunpack.c.l.b16 %v1220
    %v1314 = vunpack.c.h.b16 %v1220
    %v1315 = vunpack.c.l.b16 %v1221
    %v1316 = vunpack.c.h.b16 %v1221
    %v1317 = vunpack.c.l.b16 %v1222
    %v1318 = vunpack.c.h.b16 %v1222
    %v1319 = vunpack.c.l.b16 %v1223
    %v1320 = vunpack.c.h.b16 %v1223
    %v1321 = vunpack.c.l.b16 %v1224
    %v1322 = vunpack.c.h.b16 %v1224
    %v1323 = vunpack.c.l.b16 %v1225
    %v1324 = vunpack.c.h.b16 %v1225
    %v1325 = vunpack.c.l.b16 %v1226
    %v1326 = vunpack.c.h.b16 %v1226
    %v1327 = vunpack.c.l.b16 %v1227
    %v1328 = vunpack.c.h.b16 %v1227
    %v1329 = vunpack.c.l.b16 %v1228
    %v1330 = vunpack.c.h.b16 %v1228
    %v1331 = vpack.c.b16 %v1269, %v1267
    %v1332 = vpack.c.b16 %v1270, %v1268
    %v1333 = vpack.c.b16 %v1273, %v1271
    %v1334 = vpack.c.b16 %v1274, %v1272
    %v1335 = vpack.c.b16 %v1277, %v1275
    %v1336 = vpack.c.b16 %v1278, %v1276
    %v1337 = vpack.c.b16 %v1281, %v1279
    %v1338 = vpack.c.b16 %v1282, %v1280
    %v1339 = vpack.c.b16 %v1285, %v1283
    %v1340 = vpack.c.b16 %v1286, %v1284
    %v1341 = vpack.c.b16 %v1289, %v1287
    %v1342 = vpack.c.b16 %v1290, %v1288
    %v1343 = vpack.c.b16 %v1293, %v1291
    %v1344 = vpack.c.b16 %v1294, %v1292
    %v1345 = vpack.c.b16 %v1297, %v1295
    %v1346 = vpack.c.b16 %v1298, %v1296
    %v1347 = vpack.c.b16 %v1301, %v1299
    %v1348 = vpack.c.b16 %v1302, %v1300
    %v1349 = vpack.c.b16 %v1305, %v1303
    %v1350 = vpack.c.b16 %v1306, %v1304
    %v1351 = vpack.c.b16 %v1309, %v1307
    %v1352 = vpack.c.b16 %v1310, %v1308
    %v1353 = vpack.c.b16 %v1313, %v1311
    %v1354 = vpack.c.b16 %v1314, %v1312
    %v1355 = vpack.c.b16 %v1317, %v1315
    %v1356 = vpack.c.b16 %v1318, %v1316
    %v1357 = vpack.c.b16 %v1321, %v1319
    %v1358 = vpack.c.b16 %v1322, %v1320
    %v1359 = vpack.c.b16 %v1325, %v1323
    %v1360 = vpack.c.b16 %v1326, %v1324
    %v1361 = vpack.c.b16 %v1329, %v1327
    %v1362 = vpack.c.b16 %v1330, %v1328
    %1395 = vmatpush.bf16.msra.mxu0 %v1345
    %1396 = vmatpush.bf16.msra.mxu0 %v1343
    %1397 = vmatpush.bf16.msra.mxu0 %v1341
    %1398 = vmatpush.bf16.msra.mxu0 %v1339
    %1399 = vmatpush.bf16.msra.mxu0 %v1337
    %1400 = vmatpush.bf16.msra.mxu0 %v1335
    %1401 = vmatpush.bf16.msra.mxu0 %v1333
    %1402 = vmatpush.bf16.msra.mxu0 %v1331
    %1403 = vmatmul.bf16.gmra.mxu0 %v1193
    %v1404 = vpop.f32.mrf.mxu0
    %v1405 = vadd.f32 %v1231, %v1404
    %v1406 = vpop.f32.mrf.mxu0
    %v1407 = vadd.f32 %v1231, %v1406
    %1408 = vmatmul.bf16.gmra.mxu0 %v1195
    %v1409 = vpop.f32.mrf.mxu0
    %v1410 = vadd.f32 %v1231, %v1409
    %v1411 = vpop.f32.mrf.mxu0
    %v1412 = vadd.f32 %v1231, %v1411
    %1413 = vdwg.mxu0
    %1414 = vmatpush.bf16.msra.mxu0 %v1361
    %1415 = vmatpush.bf16.msra.mxu0 %v1359
    %1416 = vmatpush.bf16.msra.mxu0 %v1357
    %1417 = vmatpush.bf16.msra.mxu0 %v1355
    %1418 = vmatpush.bf16.msra.mxu0 %v1353
    %1419 = vmatpush.bf16.msra.mxu0 %v1351
    %1420 = vmatpush.bf16.msra.mxu0 %v1349
    %1421 = vmatpush.bf16.msra.mxu0 %v1347
    %1422 = vmatmul.bf16.gmra.mxu0 %v1194
    %v1423 = vpop.f32.mrf.mxu0
    %v1424 = vadd.f32 %v1405, %v1423
    %v1425 = vpop.f32.mrf.mxu0
    %v1426 = vadd.f32 %v1407, %v1425
    %1427 = vmatmul.bf16.gmra.mxu0 %v1196
    %v1428 = vpop.f32.mrf.mxu0
    %v1429 = vadd.f32 %v1410, %v1428
    %v1430 = vpop.f32.mrf.mxu0
    %v1431 = vadd.f32 %v1412, %v1430
    %1432 = vdwg.mxu0
    %1433 = vmatpush.bf16.msra.mxu0 %v1346
    %1434 = vmatpush.bf16.msra.mxu0 %v1344
    %1435 = vmatpush.bf16.msra.mxu0 %v1342
    %1436 = vmatpush.bf16.msra.mxu0 %v1340
    %1437 = vmatpush.bf16.msra.mxu0 %v1338
    %1438 = vmatpush.bf16.msra.mxu0 %v1336
    %1439 = vmatpush.bf16.msra.mxu0 %v1334
    %1440 = vmatpush.bf16.msra.mxu0 %v1332
    %1441 = vmatmul.bf16.gmra.mxu0 %v1193
    %v1442 = vpop.f32.mrf.mxu0
    %v1443 = vadd.f32 %v1232, %v1442
    %v1444 = vpop.f32.mrf.mxu0
    %v1445 = vadd.f32 %v1232, %v1444
    %1446 = vmatmul.bf16.gmra.mxu0 %v1195
    %v1447 = vpop.f32.mrf.mxu0
    %v1448 = vadd.f32 %v1232, %v1447
    %v1449 = vpop.f32.mrf.mxu0
    %v1450 = vadd.f32 %v1232, %v1449
    %1451 = vdwg.mxu0
    %1452 = vmatpush.bf16.msra.mxu0 %v1362
    %1453 = vmatpush.bf16.msra.mxu0 %v1360
    %1454 = vmatpush.bf16.msra.mxu0 %v1358
    %1455 = vmatpush.bf16.msra.mxu0 %v1356
    %1456 = vmatpush.bf16.msra.mxu0 %v1354
    %1457 = vmatpush.bf16.msra.mxu0 %v1352
    %1458 = vmatpush.bf16.msra.mxu0 %v1350
    %1459 = vmatpush.bf16.msra.mxu0 %v1348
    %1460 = vmatmul.bf16.gmra.mxu0 %v1194
    %v1461 = vpop.f32.mrf.mxu0
    %v1462 = vadd.f32 %v1443, %v1461
    %v1463 = vpop.f32.mrf.mxu0
    %v1464 = vadd.f32 %v1445, %v1463
    %1465 = vmatmul.bf16.gmra.mxu0 %v1196
    %v1466 = vpop.f32.mrf.mxu0
    %v1467 = vadd.f32 %v1448, %v1466
    %v1468 = vpop.f32.mrf.mxu0
    %v1469 = vadd.f32 %v1450, %v1468
    %1470 = vdwg.mxu0
    %v1471 = vmax.f32 %v1424, 0.0
    %v1472 = vmax.f32 %v1462, 0.0
    %v1473 = vmax.f32 %v1426, 0.0
    %v1474 = vmax.f32 %v1464, 0.0
    %v1475 = vmax.f32 %v1429, 0.0
    %v1476 = vmax.f32 %v1467, 0.0
    %v1477 = vmax.f32 %v1431, 0.0
    %v1478 = vmax.f32 %v1469, 0.0
    %v1479 = vpack.c.bf16 %v1473, %v1471
    %v1480 = vpack.c.bf16 %v1474, %v1472
    %v1481 = vpack.c.bf16 %v1477, %v1475
    %v1482 = vpack.c.bf16 %v1478, %v1476
    %v1483 = vld [vmem:[%s11] sm:$0xf]
    %v1484 = vld [vmem:[%s11 + $0x4] sm:$0xf]
    %v1485 = vld [vmem:[%s11 + $0x8] sm:$0xf]
    %v1486 = vld [vmem:[%s11 + $0xc] sm:$0xf]
    %v1487 = vld [vmem:[%s11 + $0x10] sm:$0xf]
    %v1488 = vld [vmem:[%s11 + $0x14] sm:$0xf]
    %v1489 = vld [vmem:[%s11 + $0x18] sm:$0xf]
    %v1490 = vld [vmem:[%s11 + $0x1c] sm:$0xf]
    %v1491 = vld [vmem:[%s11 + $0x20] sm:$0xf]
    %v1492 = vld [vmem:[%s11 + $0x24] sm:$0xf]
    %v1493 = vld [vmem:[%s11 + $0x28] sm:$0xf]
    %v1494 = vld [vmem:[%s11 + $0x2c] sm:$0xf]
    %v1495 = vld [vmem:[%s11 + $0x30] sm:$0xf]
    %v1496 = vld [vmem:[%s11 + $0x34] sm:$0xf]
    %v1497 = vld [vmem:[%s11 + $0x38] sm:$0xf]
    %v1498 = vld [vmem:[%s11 + $0x3c] sm:$0xf]
    %v1499 = vld [vmem:[%s11 + $0x40] sm:$0xf]
    %v1500 = vld [vmem:[%s11 + $0x44] sm:$0xf]
    %v1501 = vld [vmem:[%s11 + $0x48] sm:$0xf]
    %v1502 = vld [vmem:[%s11 + $0x4c] sm:$0xf]
    %v1503 = vld [vmem:[%s11 + $0x50] sm:$0xf]
    %v1504 = vld [vmem:[%s11 + $0x54] sm:$0xf]
    %v1505 = vld [vmem:[%s11 + $0x58] sm:$0xf]
    %v1506 = vld [vmem:[%s11 + $0x5c] sm:$0xf]
    %v1507 = vld [vmem:[%s11 + $0x60] sm:$0xf]
    %v1508 = vld [vmem:[%s11 + $0x64] sm:$0xf]
    %v1509 = vld [vmem:[%s11 + $0x68] sm:$0xf]
    %v1510 = vld [vmem:[%s11 + $0x6c] sm:$0xf]
    %v1511 = vld [vmem:[%s12] sm:$0x1]
    %v1513 = vperm.slane %v1511, 0
    %1519 = vrot.lane.b32.xlu0 %v1479, 96
    %v1520 = vpop.permute.xlu0 %1519
    %1521 = vrot.lane.b32.xlu0 %v1480, 96
    %v1522 = vpop.permute.xlu0 %1521
    %1523 = vrot.lane.b32.xlu0 %v1481, 96
    %v1524 = vpop.permute.xlu0 %1523
    %1525 = vrot.lane.b32.xlu0 %v1482, 96
    %v1526 = vpop.permute.xlu0 %1525
    %vm1527 = vcmask 785408
    %v1528 = vsel %vm1527, %v1520, %v1522
    %v1529 = vsel %vm1527, %v1524, %v1526
    %v1560 = vunpack.c.l.b16 %v1483
    %v1561 = vunpack.c.l.b16 %v1484
    %v1562 = vunpack.c.l.b16 %v1485
    %v1563 = vunpack.c.l.b16 %v1486
    %v1564 = vunpack.c.l.b16 %v1487
    %v1565 = vunpack.c.l.b16 %v1488
    %v1566 = vunpack.c.l.b16 %v1489
    %v1567 = vunpack.c.l.b16 %v1490
    %v1568 = vunpack.c.l.b16 %v1491
    %v1569 = vunpack.c.l.b16 %v1492
    %v1570 = vunpack.c.l.b16 %v1493
    %v1571 = vunpack.c.l.b16 %v1494
    %v1572 = vunpack.c.l.b16 %v1495
    %v1573 = vunpack.c.l.b16 %v1496
    %v1574 = vunpack.c.l.b16 %v1497
    %v1575 = vunpack.c.l.b16 %v1498
    %v1576 = vunpack.c.l.b16 %v1499
    %v1577 = vunpack.c.l.b16 %v1500
    %v1578 = vunpack.c.l.b16 %v1501
    %v1579 = vunpack.c.l.b16 %v1502
    %v1580 = vunpack.c.l.b16 %v1503
    %v1581 = vunpack.c.l.b16 %v1504
    %v1582 = vunpack.c.l.b16 %v1505
    %v1583 = vunpack.c.l.b16 %v1506
    %v1584 = vunpack.c.l.b16 %v1507
    %v1585 = vunpack.c.l.b16 %v1508
    %v1586 = vunpack.c.l.b16 %v1509
    %v1587 = vunpack.c.l.b16 %v1510
    %v1588 = vpack.c.b16 %v1561, %v1560
    %v1589 = vpack.c.b16 %v1563, %v1562
    %v1590 = vpack.c.b16 %v1565, %v1564
    %v1591 = vpack.c.b16 %v1567, %v1566
    %v1592 = vpack.c.b16 %v1569, %v1568
    %v1593 = vpack.c.b16 %v1571, %v1570
    %v1594 = vpack.c.b16 %v1573, %v1572
    %v1595 = vpack.c.b16 %v1575, %v1574
    %v1596 = vpack.c.b16 %v1577, %v1576
    %v1597 = vpack.c.b16 %v1579, %v1578
    %v1598 = vpack.c.b16 %v1581, %v1580
    %v1599 = vpack.c.b16 %v1583, %v1582
    %v1600 = vpack.c.b16 %v1585, %v1584
    %v1601 = vpack.c.b16 %v1587, %v1586
    %vm1616 = vcmask 785408
    %v1618 = vsel %vm1616, %v1522, 0
    %v1621 = vsel %vm1616, %v1526, 0
    %1623 = vmatpush.bf16.msra.mxu0 %v1595
    %1624 = vmatpush.bf16.msra.mxu0 %v1594
    %1625 = vmatpush.bf16.msra.mxu0 %v1593
    %1626 = vmatpush.bf16.msra.mxu0 %v1592
    %1627 = vmatpush.bf16.msra.mxu0 %v1591
    %1628 = vmatpush.bf16.msra.mxu0 %v1590
    %1629 = vmatpush.bf16.msra.mxu0 %v1589
    %1630 = vmatpush.bf16.msra.mxu0 %v1588
    %1631 = vmatmul.bf16.gmra.mxu0 %v1528
    %v1632 = vpop.f32.mrf.mxu0
    %v1633 = vadd.f32 %v1513, %v1632
    %v1634 = vpop.f32.mrf.mxu0
    %v1635 = vadd.f32 %v1513, %v1634
    %1636 = vmatmul.bf16.gmra.mxu0 %v1529
    %v1637 = vpop.f32.mrf.mxu0
    %v1638 = vadd.f32 %v1513, %v1637
    %v1639 = vpop.f32.mrf.mxu0
    %v1640 = vadd.f32 %v1513, %v1639
    %1641 = vdwg.mxu0
    %1642 = vmatpush.bf16.msra.mxu0 0
    %1643 = vmatpush.bf16.msra.mxu0 0
    %1644 = vmatpush.bf16.msra.mxu0 %v1601
    %1645 = vmatpush.bf16.msra.mxu0 %v1600
    %1646 = vmatpush.bf16.msra.mxu0 %v1599
    %1647 = vmatpush.bf16.msra.mxu0 %v1598
    %1648 = vmatpush.bf16.msra.mxu0 %v1597
    %1649 = vmatpush.bf16.msra.mxu0 %v1596
    %1650 = vmatmul.bf16.gmra.mxu0 %v1618
    %v1651 = vpop.f32.mrf.mxu0
    %v1652 = vadd.f32 %v1633, %v1651
    %v1653 = vpop.f32.mrf.mxu0
    %v1654 = vadd.f32 %v1635, %v1653
    %1655 = vmatmul.bf16.gmra.mxu0 %v1621
    %v1656 = vpop.f32.mrf.mxu0
    %v1657 = vadd.f32 %v1638, %v1656
    %v1658 = vpop.f32.mrf.mxu0
    %v1659 = vadd.f32 %v1640, %v1658
    %1660 = vdwg.mxu0
    %v1661 = vld [vmem:[#allocation2] sm:$0xff]
    %v1662 = vld [vmem:[#allocation2 + $0x8] sm:$0xff]
    %v1663 = vld [vmem:[#allocation2 + $0x10] sm:$0xff]
    %v1664 = vld [vmem:[#allocation2 + $0x18] sm:$0xff]
    %1669 = vrot.lane.b32.xlu0 %v1661, 32
    %v1670 = vpop.permute.xlu0 %1669
    %1671 = vrot.lane.b32.xlu0 %v1662, 32
    %v1672 = vpop.permute.xlu0 %1671
    %1673 = vrot.lane.b32.xlu0 %v1663, 32
    %v1674 = vpop.permute.xlu0 %1673
    %1675 = vrot.lane.b32.xlu0 %v1664, 32
    %v1676 = vpop.permute.xlu0 %1675
    %1685 = vrot.lane.b32.xlu0 %v1424, 64
    %v1686 = vpop.permute.xlu0 %1685
    %1687 = vrot.lane.b32.xlu0 %v1426, 64
    %v1688 = vpop.permute.xlu0 %1687
    %1689 = vrot.lane.b32.xlu0 %v1429, 64
    %v1690 = vpop.permute.xlu0 %1689
    %1691 = vrot.lane.b32.xlu0 %v1431, 64
    %v1692 = vpop.permute.xlu0 %1691
    %1701 = vrot.lane.b32.xlu0 %v1652, 96
    %v1702 = vpop.permute.xlu0 %1701
    %1703 = vrot.lane.b32.xlu0 %v1654, 96
    %v1704 = vpop.permute.xlu0 %1703
    %1705 = vrot.lane.b32.xlu0 %v1657, 96
    %v1706 = vpop.permute.xlu0 %1705
    %1707 = vrot.lane.b32.xlu0 %v1659, 96
    %v1708 = vpop.permute.xlu0 %1707
    %vm1713 = vcmask 261120
    %v1714 = vsel %vm1713, %v680, %v1670
    %v1715 = vsel %vm1713, %v682, %v1672
    %v1716 = vsel %vm1713, %v685, %v1674
    %v1717 = vsel %vm1713, %v687, %v1676
    %vm1718 = vcmask 523264
    %v1719 = vsel %vm1718, %v1714, %v1686
    %v1720 = vsel %vm1718, %v1715, %v1688
    %v1721 = vsel %vm1718, %v1716, %v1690
    %v1722 = vsel %vm1718, %v1717, %v1692
    %v1723 = vsel %vm1616, %v1719, %v1702
    %v1724 = vsel %vm1616, %v1720, %v1704
    %v1725 = vsel %vm1616, %v1721, %v1706
    %v1726 = vsel %vm1616, %v1722, %v1708
    %v1727 = vpack.c.bf16 %v1724, %v1723
    %v1728 = vpack.c.bf16 %v1726, %v1725
    %v1729 = vld [vmem:[#allocation8] sm:$0xf]
    %v1730 = vld [vmem:[#allocation8 + $0x4] sm:$0xf]
    %v1731 = vld [vmem:[#allocation8 + $0x8] sm:$0xf]
    %v1732 = vld [vmem:[#allocation8 + $0xc] sm:$0xf]
    %v1733 = vld [vmem:[#allocation8 + $0x10] sm:$0xf]
    %v1734 = vld [vmem:[#allocation8 + $0x14] sm:$0xf]
    %v1735 = vld [vmem:[#allocation8 + $0x18] sm:$0xf]
    %v1736 = vld [vmem:[#allocation8 + $0x1c] sm:$0xf]
    %v1737 = vld [vmem:[#allocation8 + $0x20] sm:$0xf]
    %v1738 = vld [vmem:[#allocation8 + $0x24] sm:$0xf]
    %v1739 = vld [vmem:[#allocation8 + $0x28] sm:$0xf]
    %v1740 = vld [vmem:[#allocation8 + $0x2c] sm:$0xf]
    %v1741 = vld [vmem:[#allocation8 + $0x30] sm:$0xf]
    %v1742 = vld [vmem:[#allocation8 + $0x34] sm:$0xf]
    %v1743 = vld [vmem:[#allocation8 + $0x38] sm:$0xf]
    %v1744 = vld [vmem:[#allocation8 + $0x3c] sm:$0xf]
    %v1745 = vld [vmem:[%s14] sm:$0x1]
    %v1747 = vperm.slane %v1745, 0
    %v1765 = vunpack.c.l.b16 %v1729
    %v1766 = vunpack.c.l.b16 %v1730
    %v1767 = vunpack.c.l.b16 %v1731
    %v1768 = vunpack.c.l.b16 %v1732
    %v1769 = vunpack.c.l.b16 %v1733
    %v1770 = vunpack.c.l.b16 %v1734
    %v1771 = vunpack.c.l.b16 %v1735
    %v1772 = vunpack.c.l.b16 %v1736
    %v1773 = vunpack.c.l.b16 %v1737
    %v1774 = vunpack.c.l.b16 %v1738
    %v1775 = vunpack.c.l.b16 %v1739
    %v1776 = vunpack.c.l.b16 %v1740
    %v1777 = vunpack.c.l.b16 %v1741
    %v1778 = vunpack.c.l.b16 %v1742
    %v1779 = vunpack.c.l.b16 %v1743
    %v1780 = vunpack.c.l.b16 %v1744
    %v1781 = vpack.c.b16 %v1766, %v1765
    %v1782 = vpack.c.b16 %v1768, %v1767
    %v1783 = vpack.c.b16 %v1770, %v1769
    %v1784 = vpack.c.b16 %v1772, %v1771
    %v1785 = vpack.c.b16 %v1774, %v1773
    %v1786 = vpack.c.b16 %v1776, %v1775
    %v1787 = vpack.c.b16 %v1778, %v1777
    %v1788 = vpack.c.b16 %v1780, %v1779
    %1797 = vmatpush.bf16.msra.mxu0 %v1788
    %1798 = vmatpush.bf16.msra.mxu0 %v1787
    %1799 = vmatpush.bf16.msra.mxu0 %v1786
    %1800 = vmatpush.bf16.msra.mxu0 %v1785
    %1801 = vmatpush.bf16.msra.mxu0 %v1784
    %1802 = vmatpush.bf16.msra.mxu0 %v1783
    %1803 = vmatpush.bf16.msra.mxu0 %v1782
    %1804 = vmatpush.bf16.msra.mxu0 %v1781
    %1805 = vmatmul.bf16.gmra.mxu0 %v1727
    %v1806 = vpop.f32.mrf.mxu0
    %v1807 = vadd.f32 %v1747, %v1806
    %v1808 = vpop.f32.mrf.mxu0
    %v1809 = vadd.f32 %v1747, %v1808
    %1810 = vmatmul.bf16.gmra.mxu0 %v1728
    %v1811 = vpop.f32.mrf.mxu0
    %v1812 = vadd.f32 %v1747, %v1811
    %v1813 = vpop.f32.mrf.mxu0
    %v1814 = vadd.f32 %v1747, %v1813
    %1815 = vdwg.mxu0
    %v1816 = vlaneseq
    %v1817 = vand.u32 %v1816, 127
    %vm1818 = vcmp.lt.s32.totalorder %v1817, 12
    %v1819 = vxor.u32 %v1807, 2147483648
    %v1820 = vxor.u32 %v1809, 2147483648
    %v1821 = vxor.u32 %v1812, 2147483648
    %v1822 = vxor.u32 %v1814, 2147483648
    %v1823 = vmul.f32 %v1819, 1.442695
    %v1824 = vpow.pop %v1823
    %v1825 = vmul.f32 %v1820, 1.442695
    %v1826 = vpow.pop %v1825
    %v1827 = vmul.f32 %v1821, 1.442695
    %v1828 = vpow.pop %v1827
    %v1829 = vmul.f32 %v1822, 1.442695
    %v1830 = vpow.pop %v1829
    %v1831 = vadd.f32 %v1824, 1.0
    %v1832 = vadd.f32 %v1826, 1.0
    %v1833 = vadd.f32 %v1828, 1.0
    %v1834 = vadd.f32 %v1830, 1.0
    %v1835 = vrcp.pop %v1831
    %v1836 = vmul.f32 %v1831, %v1835
    %v1837 = vsub.f32 1.0, %v1836
    %v1838 = vmul.f32 %v1835, %v1837
    %v1839 = vadd.f32 %v1835, %v1838
    %vm1840 = vweird.f32 %v1831
    %vm1841 = vweird.f32 %v1835
    %vm1842 = vmor %vm1840, %vm1841
    %v1843 = vsel %vm1842, %v1835, %v1839
    %v1844 = vand.u32 2147483647, %v1831
    %vm1845 = vcmp.eq.f32.partialorder %v1844, 8.507059e+37
    %v1846 = vand.u32 %v1831, 2147483648
    %v1847 = vor.u32 1.1754944e-38, %v1846
    %v1848 = vsel %vm1845, %v1847, %v1843
    %v1849 = vmul.f32 1.0, %v1848
    %v1850 = vrcp.pop %v1832
    %v1851 = vmul.f32 %v1832, %v1850
    %v1852 = vsub.f32 1.0, %v1851
    %v1853 = vmul.f32 %v1850, %v1852
    %v1854 = vadd.f32 %v1850, %v1853
    %vm1855 = vweird.f32 %v1832
    %vm1856 = vweird.f32 %v1850
    %vm1857 = vmor %vm1855, %vm1856
    %v1858 = vsel %vm1857, %v1850, %v1854
    %v1859 = vand.u32 2147483647, %v1832
    %vm1860 = vcmp.eq.f32.partialorder %v1859, 8.507059e+37
    %v1861 = vand.u32 %v1832, 2147483648
    %v1862 = vor.u32 1.1754944e-38, %v1861
    %v1863 = vsel %vm1860, %v1862, %v1858
    %v1864 = vmul.f32 1.0, %v1863
    %v1865 = vrcp.pop %v1833
    %v1866 = vmul.f32 %v1833, %v1865
    %v1867 = vsub.f32 1.0, %v1866
    %v1868 = vmul.f32 %v1865, %v1867
    %v1869 = vadd.f32 %v1865, %v1868
    %vm1870 = vweird.f32 %v1833
    %vm1871 = vweird.f32 %v1865
    %vm1872 = vmor %vm1870, %vm1871
    %v1873 = vsel %vm1872, %v1865, %v1869
    %v1874 = vand.u32 2147483647, %v1833
    %vm1875 = vcmp.eq.f32.partialorder %v1874, 8.507059e+37
    %v1876 = vand.u32 %v1833, 2147483648
    %v1877 = vor.u32 1.1754944e-38, %v1876
    %v1878 = vsel %vm1875, %v1877, %v1873
    %v1879 = vmul.f32 1.0, %v1878
    %v1880 = vrcp.pop %v1834
    %v1881 = vmul.f32 %v1834, %v1880
    %v1882 = vsub.f32 1.0, %v1881
    %v1883 = vmul.f32 %v1880, %v1882
    %v1884 = vadd.f32 %v1880, %v1883
    %vm1885 = vweird.f32 %v1834
    %vm1886 = vweird.f32 %v1880
    %vm1887 = vmor %vm1885, %vm1886
    %v1888 = vsel %vm1887, %v1880, %v1884
    %v1889 = vand.u32 2147483647, %v1834
    %vm1890 = vcmp.eq.f32.partialorder %v1889, 8.507059e+37
    %v1891 = vand.u32 %v1834, 2147483648
    %v1892 = vor.u32 1.1754944e-38, %v1891
    %v1893 = vsel %vm1890, %v1892, %v1888
    %v1894 = vmul.f32 1.0, %v1893
    %v1895 = vsel %vm1818, %v1849, %v1807
    %v1896 = vsel %vm1818, %v1864, %v1809
    %v1897 = vsel %vm1818, %v1879, %v1812
    %v1898 = vsel %vm1818, %v1894, %v1814
    %1899 = vst [vmem:[#allocation10] sm:$0xff] %v1895
    %1900 = vst [vmem:[#allocation10 + $0x8] sm:$0xff] %v1896
    %1901 = vst [vmem:[#allocation10 + $0x10] sm:$0xff] %v1897
    %1902 = vst [vmem:[#allocation10 + $0x18] sm:$0xff] %v1898
    // Predicated region
    $region78: #{tpu_custom_call.1} parent=1 // pred_check
      _
    $region79: #{tpu_custom_call.1} parent=1 // pred_check_branch
      %1904 = sbr.rel (0) target = $region81
    $region80: #{tpu_custom_call.1} parent=1 // pred_region
      %1906 = vsyncadd [#allocation4], 0
      %s1907 = sshll.u32 [#allocation10], 4
      %s1908 = int_to_ptr.vmem [resolvable:$true] %s1907
      %s1909 = sshll.u32 %s15, 4
      %s1910 = int_to_ptr.hbm [resolvable:$true] %s1909
      %1915 = dma.vmem_to_hbm [thread:$0]  %s1908, 512, %s1910, [#allocation4], 128, 128, 8
    $region81: #{tpu_custom_call.1} parent=1 // pred_fallthru
      _
    // Predicated region
    $region82: #{tpu_custom_call.1} parent=1 // pred_check
      _
    $region83: #{tpu_custom_call.1} parent=1 // pred_check_branch
      %1917 = sbr.rel (0) target = $region85
    $region84: #{tpu_custom_call.1} parent=1 // pred_region
      %1919 = dma.done [#allocation4], 512
    $region85: #{tpu_custom_call.1} parent=1 // pred_fallthru
      _
    %1920 = vsyncpa [#allocation3], 1
    %1921 = vsyncpa [#allocation6], 1
    %1922 = vsyncpa [#allocation9], 1
    %1923 = vsyncpa [#allocation4], 1

</llo_original>
